<compile_context>
chip_gen: v6e
topology: v6e:2x2x1
jax: 0.10.0
libtpu: 0.0.40
codegen_flags: <defaults>
</compile_context>

<pallas_src>
import functools
import math

import jax
import jax.numpy as jnp
from jax.experimental import pallas as pl
from jax.experimental.pallas import tpu as pltpu


# ----------------------------------------------------------------------------
# Helpers
# ----------------------------------------------------------------------------
def _row_tile(m, target=512):
    """Pick a row-tile size: whole array if small, else a multiple-of-8 divisor."""
    if m <= target:
        return m
    t = (target // 8) * 8
    while t >= 8:
        if m % t == 0:
            return t
        t -= 8
    return m


_MOSAIC_KW = dict(vmem_limit_bytes=32 * 1024 * 1024)


def _layernorm_f32(y, g, b, eps):
    """LayerNorm over the last axis in f32; returns f32."""
    mu = jnp.mean(y, axis=-1, keepdims=True)
    yc = y - mu
    var = jnp.mean(yc * yc, axis=-1, keepdims=True)
    return (yc * jax.lax.rsqrt(var + eps)) * g + b


# ----------------------------------------------------------------------------
# Pallas kernels
# ----------------------------------------------------------------------------
def _emb_ln_kernel(x_ref, g_ref, b_ref, o_ref, *, eps):
    x = x_ref[...].astype(jnp.float32)
    o_ref[...] = _layernorm_f32(x, g_ref[...], b_ref[...], eps).astype(o_ref.dtype)


def _attn_block_ln_kernel(x_ref, wqkv_ref, bqkv_ref, mask_ref, wo_ref, bo_ref,
                          g_ref, b_ref, o_ref, *, scale, num_heads, eps):
    # Per batch element: fused QKV projection + multi-head SDPA + output proj
    # + residual add + LayerNorm.
    # x: (S, H) bf16; wqkv: (H, 3H) bf16; bqkv: (1, 3H) f32; mask: (1, S) f32
    # additive; wo: (H, H) bf16; bo/g/b: (1, H) f32; out: (S, H) bf16.
    S, H = x_ref.shape
    D = H // num_heads

    x_bf = x_ref[...].astype(jnp.bfloat16)
    # Single lane-dense (S,H)x(H,3H) matmul for Q/K/V of all heads.  Bias is
    # added in the f32 accumulator and the slab is downcast ONCE so the buffer
    # held live across the head loop is bf16 (half the VMEM/vreg footprint).
    qkv = (jnp.dot(x_bf, wqkv_ref[...], preferred_element_type=jnp.float32)
           + bqkv_ref[...]).astype(jnp.bfloat16)                       # (S, 3H)
    mask = mask_ref[...]                                               # (1, S)

    ctx_heads = []
    for h in range(num_heads):               # static unroll; nH small here
        q = qkv[:, h * D:(h + 1) * D]                                  # (S, D)
        k = qkv[:, H + h * D:H + (h + 1) * D]                          # (S, D)
        v = qkv[:, 2 * H + h * D:2 * H + (h + 1) * D]                  # (S, D)
        # Contract on D directly: no explicit K transpose (XLU copy).
        s = jax.lax.dot_general(q, k, (((1,), (1,)), ((), ())),
                                preferred_element_type=jnp.float32) * scale
        s = s + mask                        # broadcast over query rows
        s = s - jnp.max(s, axis=-1, keepdims=True)
        p = jnp.exp(s)
        p = p * pl.reciprocal(jnp.sum(p, axis=-1, keepdims=True), approx=True)
        ctx = jnp.dot(p.astype(jnp.bfloat16), v,
                      preferred_element_type=jnp.float32)              # (S, D)
        ctx_heads.append(ctx.astype(jnp.bfloat16))

    # Pack heads into one lane-dense (S, H) bf16 slab, then ONE K=H matmul for
    # the output projection (keeps the MXU contraction deep).
    ctx_all = jnp.concatenate(ctx_heads, axis=-1)                      # (S, H)
    attn = jnp.dot(ctx_all, wo_ref[...],
                   preferred_element_type=jnp.float32) + bo_ref[...]   # (S, H)

    # Fused residual add + LayerNorm epilogue (f32 math).
    y = attn + x_ref[...].astype(jnp.float32)
    o_ref[...] = _layernorm_f32(y, g_ref[...], b_ref[...], eps).astype(o_ref.dtype)


def _ffn_ln_kernel(x_ref, w1_ref, b1_ref, w2_ref, b2_ref, g_ref, b_ref, o_ref,
                   *, eps):
    # Fused: x @ w1 + b1 -> GELU(tanh) -> @ w2 + b2 -> +residual -> LayerNorm.
    x_bf = x_ref[...].astype(jnp.bfloat16)
    h = jnp.dot(x_bf, w1_ref[...], preferred_element_type=jnp.float32) + b1_ref[...]
    # tanh-approximation GELU (f32 elementwise)
    h = 0.5 * h * (1.0 + jnp.tanh(0.7978845608028654 * (h + 0.044715 * h * h * h)))
    y = jnp.dot(h.astype(jnp.bfloat16), w2_ref[...],
                preferred_element_type=jnp.float32) + b2_ref[...]
    y = y + x_ref[...].astype(jnp.float32)
    o_ref[...] = _layernorm_f32(y, g_ref[...], b_ref[...], eps).astype(o_ref.dtype)


# ----------------------------------------------------------------------------
# Pallas wrappers
# ----------------------------------------------------------------------------
def pallas_embedding_layernorm(x, gamma, beta, eps=1e-12):
    M, H = x.shape
    tm = _row_tile(M)
    row_spec = pl.BlockSpec((tm, H), lambda i: (i, 0))
    vec_spec = pl.BlockSpec((1, H), lambda i: (0, 0))
    return pl.pallas_call(
        functools.partial(_emb_ln_kernel, eps=eps),
        out_shape=jax.ShapeDtypeStruct((M, H), jnp.bfloat16),
        grid=(M // tm,),
        in_specs=[row_spec, vec_spec, vec_spec],
        out_specs=row_spec,
        compiler_params=pltpu.CompilerParams(
            dimension_semantics=("parallel",), **_MOSAIC_KW),
    )(x, gamma, beta)


def pallas_attention_block(x, mask_add, wqkv, bqkv, wo, bo, ln_g, ln_b,
                           num_heads, eps=1e-12):
    # x: (B, S, H) bf16; mask_add: (B, 1, S) f32 additive; output: (B, S, H) bf16.
    B, S, H = x.shape
    D = H // num_heads
    scale = 1.0 / math.sqrt(D)
    kernel = functools.partial(_attn_block_ln_kernel, scale=scale,
                               num_heads=num_heads, eps=eps)

    def _full(*shape):
        return pl.BlockSpec(shape, lambda b, _n=len(shape): (0,) * _n)

    return pl.pallas_call(
        kernel,
        out_shape=jax.ShapeDtypeStruct((B, S, H), jnp.bfloat16),
        grid=(B,),
        in_specs=[
            pl.BlockSpec((None, S, H), lambda b: (b, 0, 0)),   # x (residual)
            _full(H, 3 * H),                                   # wqkv
            _full(1, 3 * H),                                   # bqkv
            pl.BlockSpec((None, 1, S), lambda b: (b, 0, 0)),   # additive mask
            _full(H, H),                                       # wo
            _full(1, H),                                       # bo
            _full(1, H),                                       # ln gamma
            _full(1, H),                                       # ln beta
        ],
        out_specs=pl.BlockSpec((None, S, H), lambda b: (b, 0, 0)),
        compiler_params=pltpu.CompilerParams(
            dimension_semantics=("parallel",), **_MOSAIC_KW),
    )(x, wqkv, bqkv, mask_add, wo, bo, ln_g, ln_b)


def pallas_ffn_block(x, w1, b1, w2, b2, ln_g, ln_b, eps=1e-12):
    M, H = x.shape
    I = w1.shape[1]
    tm = _row_tile(M)
    row_spec = pl.BlockSpec((tm, H), lambda i: (i, 0))
    return pl.pallas_call(
        functools.partial(_ffn_ln_kernel, eps=eps),
        out_shape=jax.ShapeDtypeStruct((M, H), jnp.bfloat16),
        grid=(M // tm,),
        in_specs=[
            row_spec,
            pl.BlockSpec((H, I), lambda i: (0, 0)),
            pl.BlockSpec((1, I), lambda i: (0, 0)),
            pl.BlockSpec((I, H), lambda i: (0, 0)),
            pl.BlockSpec((1, H), lambda i: (0, 0)),
            pl.BlockSpec((1, H), lambda i: (0, 0)),
            pl.BlockSpec((1, H), lambda i: (0, 0)),
        ],
        out_specs=row_spec,
        compiler_params=pltpu.CompilerParams(
            dimension_semantics=("parallel",), **_MOSAIC_KW),
    )(x, w1, b1, w2, b2, ln_g, ln_b)


# ----------------------------------------------------------------------------
# Model (synthetic, deterministic parameters)
# ----------------------------------------------------------------------------
CONFIG = dict(
    vocab_size=100,
    max_position=16,
    type_vocab_size=2,
    hidden=32,
    num_heads=2,
    intermediate=64,
    num_layers=2,
    num_classes=3,
)


def init_params(key, cfg):
    H = cfg["hidden"]
    I = cfg["intermediate"]
    C = cfg["num_classes"]
    std = 0.02

    def nrm(k, shape):
        return std * jax.random.normal(k, shape, dtype=jnp.float32)

    keys = jax.random.split(key, 8 + cfg["num_layers"])
    params = {
        "word_emb": nrm(keys[0], (cfg["vocab_size"], H)),
        "pos_emb": nrm(keys[1], (cfg["max_position"], H)),
        "type_emb": nrm(keys[2], (cfg["type_vocab_size"], H)),
        "emb_ln_g": jnp.ones((1, H), jnp.float32),
        "emb_ln_b": jnp.zeros((1, H), jnp.float32),
        "cls_w": nrm(keys[3], (H, C)),    # (in, out); PyTorch Linear is x @ W.T
        "cls_b": jnp.zeros((C,), jnp.float32),
        "layers": [],
    }
    for li in range(cfg["num_layers"]):
        lk = jax.random.split(keys[8 + li], 6)
        wq, wk, wv = nrm(lk[0], (H, H)), nrm(lk[1], (H, H)), nrm(lk[2], (H, H))
        params["layers"].append({
            # fused, bf16 matmul weights (f32 biases / LN params)
            "wqkv": jnp.concatenate([wq, wk, wv], axis=1).astype(jnp.bfloat16),
            "bqkv": jnp.zeros((1, 3 * H), jnp.float32),
            "wo": nrm(lk[3], (H, H)).astype(jnp.bfloat16),
            "bo": jnp.zeros((1, H), jnp.float32),
            "ln1_g": jnp.ones((1, H), jnp.float32),
            "ln1_b": jnp.zeros((1, H), jnp.float32),
            "w1": nrm(lk[4], (H, I)).astype(jnp.bfloat16),
            "b1": jnp.zeros((1, I), jnp.float32),
            "w2": nrm(lk[5], (I, H)).astype(jnp.bfloat16),
            "b2": jnp.zeros((1, H), jnp.float32),
            "ln2_g": jnp.ones((1, H), jnp.float32),
            "ln2_b": jnp.zeros((1, H), jnp.float32),
        })
    return params


def rubert_lin_text_forward(params, input_ids, attention_mask, cfg):
    """Replicates RuBERTLinText.forward: BERT -> last_hidden_state[:, 0, :] -> Linear."""
    B, S = input_ids.shape
    H = cfg["hidden"]
    nH = cfg["num_heads"]

    # --- embeddings (gathers are plain-JAX glue; the LayerNorm is a Pallas kernel) ---
    word = params["word_emb"][input_ids]                           # (B, S, H)
    pos = params["pos_emb"][jnp.arange(S)][None, :, :]             # (1, S, H)
    typ = params["type_emb"][0][None, None, :]                     # token_type_ids == 0
    emb = (word + pos + typ).reshape(B * S, H)
    x = pallas_embedding_layernorm(emb, params["emb_ln_g"], params["emb_ln_b"])  # (B*S,H) bf16

    # --- extended attention mask, BERT-style additive, applied in f32 in-kernel ---
    mask_add = ((1.0 - attention_mask.astype(jnp.float32)) * -1e9)[:, None, :]   # (B,1,S)

    # --- transformer encoder: 2 fused kernels per layer ---
    for lp in params["layers"]:
        x3 = pallas_attention_block(x.reshape(B, S, H), mask_add,
                                    lp["wqkv"], lp["bqkv"], lp["wo"], lp["bo"],
                                    lp["ln1_g"], lp["ln1_b"], nH)      # (B,S,H) bf16
        x = pallas_ffn_block(x3.reshape(B * S, H),
                             lp["w1"], lp["b1"], lp["w2"], lp["b2"],
                             lp["ln2_g"], lp["ln2_b"])                 # (B*S,H) bf16

    # --- CLS token + classifier head (tiny: plain jnp, avoids a 3-lane-wide kernel) ---
    cls_token = x.reshape(B, S, H)[:, 0, :].astype(jnp.float32)        # (B, H)
    logits = cls_token @ params["cls_w"] + params["cls_b"]
    return logits                                                      # (B, num_classes)


# ----------------------------------------------------------------------------
# Main
# ----------------------------------------------------------------------------
if __name__ == "__main__":
    cfg = CONFIG
    batch, seq = 2, 8

    key = jax.random.PRNGKey(0)
    k_param, k_ids = jax.random.split(key)

    params = init_params(k_param, cfg)
    input_ids = jax.random.randint(k_ids, (batch, seq), 0, cfg["vocab_size"],
                                   dtype=jnp.int32)
    attention_mask = jnp.ones((batch, seq), dtype=jnp.int32)
    attention_mask = attention_mask.at[1, -2:].set(0)   # exercise padding mask

    fwd = jax.jit(functools.partial(rubert_lin_text_forward, cfg=cfg))
    logits = fwd(params, input_ids, attention_mask)
    jax.block_until_ready(logits)

    assert logits.shape == (batch, cfg["num_classes"])
    assert jnp.all(jnp.isfinite(logits))
    print("KERNEL_OK")
</pallas_src>

<mosaic_0001>
module attributes {stable_mosaic.version = 11 : i64} {
  func.func @_emb_ln_kernel(%arg0: i32, %arg1: memref<16x32xf32, #tpu.memory_space<vmem>>, %arg2: memref<1x32xf32, #tpu.memory_space<vmem>>, %arg3: memref<1x32xf32, #tpu.memory_space<vmem>>, %arg4: memref<16x32xbf16, #tpu.memory_space<vmem>>) attributes {dimension_semantics = [#tpu.dimension_semantics<parallel>], iteration_bounds = array<i64: 1>, scalar_prefetch = 0 : i64, scratch_operands = 0 : i64, tpu.core_type = #tpu.core_type<tc>, window_params = [{transform_indices = @transform_0, window_bounds = array<i64: 16, 32>}, {pipeline_mode = #tpu.pipeline_mode<synchronous>, transform_indices = @transform_1, window_bounds = array<i64: 1, 32>}, {pipeline_mode = #tpu.pipeline_mode<synchronous>, transform_indices = @transform_2, window_bounds = array<i64: 1, 32>}, {transform_indices = @transform_3, window_bounds = array<i64: 16, 32>}]} {
    %c0 = arith.constant 0 : index
    %c0_0 = arith.constant 0 : index
    %0 = vector.load %arg1[%c0, %c0_0] : memref<16x32xf32, #tpu.memory_space<vmem>>, vector<16x32xf32>
    %c0_1 = arith.constant 0 : index
    %c0_2 = arith.constant 0 : index
    %1 = vector.load %arg2[%c0_1, %c0_2] : memref<1x32xf32, #tpu.memory_space<vmem>>, vector<1x32xf32>
    %c0_3 = arith.constant 0 : index
    %c0_4 = arith.constant 0 : index
    %2 = vector.load %arg3[%c0_3, %c0_4] : memref<1x32xf32, #tpu.memory_space<vmem>>, vector<1x32xf32>
    %cst = arith.constant dense<0.000000e+00> : vector<16xf32>
    %3 = vector.multi_reduction <add>, %0, %cst [1] : vector<16x32xf32> to vector<16xf32>
    %4 = vector.shape_cast %3 : vector<16xf32> to vector<16x1xf32>
    %cst_5 = arith.constant 3.200000e+01 : f32
    %5 = vector.broadcast %cst_5 : f32 to vector<16x1xf32>
    %6 = arith.divf %4, %5 : vector<16x1xf32>
    %7 = vector.broadcast %6 : vector<16x1xf32> to vector<16x32xf32>
    %8 = arith.subf %0, %7 : vector<16x32xf32>
    %9 = arith.mulf %8, %8 : vector<16x32xf32>
    %cst_6 = arith.constant dense<0.000000e+00> : vector<16xf32>
    %10 = vector.multi_reduction <add>, %9, %cst_6 [1] : vector<16x32xf32> to vector<16xf32>
    %11 = vector.shape_cast %10 : vector<16xf32> to vector<16x1xf32>
    %cst_7 = arith.constant 3.200000e+01 : f32
    %12 = vector.broadcast %cst_7 : f32 to vector<16x1xf32>
    %13 = arith.divf %11, %12 : vector<16x1xf32>
    %cst_8 = arith.constant 9.99999996E-13 : f32
    %14 = vector.broadcast %cst_8 : f32 to vector<16x1xf32>
    %15 = arith.addf %13, %14 : vector<16x1xf32>
    %16 = math.rsqrt %15 : vector<16x1xf32>
    %17 = vector.broadcast %16 : vector<16x1xf32> to vector<16x32xf32>
    %18 = arith.mulf %8, %17 : vector<16x32xf32>
    %19 = vector.broadcast %1 : vector<1x32xf32> to vector<16x32xf32>
    %20 = arith.mulf %18, %19 : vector<16x32xf32>
    %21 = vector.broadcast %2 : vector<1x32xf32> to vector<16x32xf32>
    %22 = arith.addf %20, %21 : vector<16x32xf32>
    %23 = arith.truncf %22 : vector<16x32xf32> to vector<16x32xbf16>
    %c0_9 = arith.constant 0 : index
    %c0_10 = arith.constant 0 : index
    %24 = vector.load %arg4[%c0_9, %c0_10] : memref<16x32xbf16, #tpu.memory_space<vmem>>, vector<16x32xbf16>
    tpu.vector_store %arg4[%c0_9, %c0_10], %23 {strides = array<i32>} : memref<16x32xbf16, #tpu.memory_space<vmem>>, vector<16x32xbf16>,
    return
  }
  func.func @transform_0(%arg0: i32) -> (i32, i32) {
    %c0_i32 = arith.constant 0 : i32
    %c0_i32_0 = arith.constant 0 : i32
    return %arg0, %c0_i32 : i32, i32
  }
  func.func @transform_1(%arg0: i32) -> (i32, i32) {
    %c0_i32 = arith.constant 0 : i32
    %c0_i32_0 = arith.constant 0 : i32
    %c0_i32_1 = arith.constant 0 : i32
    return %c0_i32, %c0_i32_0 : i32, i32
  }
  func.func @transform_2(%arg0: i32) -> (i32, i32) {
    %c0_i32 = arith.constant 0 : i32
    %c0_i32_0 = arith.constant 0 : i32
    %c0_i32_1 = arith.constant 0 : i32
    return %c0_i32, %c0_i32_0 : i32, i32
  }
  func.func @transform_3(%arg0: i32) -> (i32, i32) {
    %c0_i32 = arith.constant 0 : i32
    %c0_i32_0 = arith.constant 0 : i32
    return %arg0, %c0_i32 : i32, i32
  }
}

module attributes {stable_mosaic.version = 11 : i64} {
  func.func @_attn_block_ln_kernel(%arg0: i32, %arg1: memref<1x8x32xbf16, #tpu.memory_space<vmem>>, %arg2: memref<32x96xbf16, #tpu.memory_space<vmem>>, %arg3: memref<1x96xf32, #tpu.memory_space<vmem>>, %arg4: memref<1x1x8xf32, #tpu.memory_space<vmem>>, %arg5: memref<32x32xbf16, #tpu.memory_space<vmem>>, %arg6: memref<1x32xf32, #tpu.memory_space<vmem>>, %arg7: memref<1x32xf32, #tpu.memory_space<vmem>>, %arg8: memref<1x32xf32, #tpu.memory_space<vmem>>, %arg9: memref<1x8x32xbf16, #tpu.memory_space<vmem>>) attributes {dimension_semantics = [#tpu.dimension_semantics<parallel>], iteration_bounds = array<i64: 2>, scalar_prefetch = 0 : i64, scratch_operands = 0 : i64, tpu.core_type = #tpu.core_type<tc>, window_params = [{transform_indices = @transform_0, window_bounds = array<i64: 1, 8, 32>}, {pipeline_mode = #tpu.pipeline_mode<synchronous>, transform_indices = @transform_1, window_bounds = array<i64: 32, 96>}, {pipeline_mode = #tpu.pipeline_mode<synchronous>, transform_indices = @transform_2, window_bounds = array<i64: 1, 96>}, {transform_indices = @transform_3, window_bounds = array<i64: 1, 1, 8>}, {pipeline_mode = #tpu.pipeline_mode<synchronous>, transform_indices = @transform_4, window_bounds = array<i64: 32, 32>}, {pipeline_mode = #tpu.pipeline_mode<synchronous>, transform_indices = @transform_5, window_bounds = array<i64: 1, 32>}, {pipeline_mode = #tpu.pipeline_mode<synchronous>, transform_indices = @transform_6, window_bounds = array<i64: 1, 32>}, {pipeline_mode = #tpu.pipeline_mode<synchronous>, transform_indices = @transform_7, window_bounds = array<i64: 1, 32>}, {transform_indices = @transform_8, window_bounds = array<i64: 1, 8, 32>}]} {
    %c0 = arith.constant 0 : index
    %c0_0 = arith.constant 0 : index
    %c0_1 = arith.constant 0 : index
    %0 = vector.load %arg1[%c0, %c0_0, %c0_1] : memref<1x8x32xbf16, #tpu.memory_space<vmem>>, vector<1x8x32xbf16>
    %1 = vector.shape_cast %0 : vector<1x8x32xbf16> to vector<8x32xbf16>
    %c0_2 = arith.constant 0 : index
    %c0_3 = arith.constant 0 : index
    %2 = vector.load %arg2[%c0_2, %c0_3] : memref<32x96xbf16, #tpu.memory_space<vmem>>, vector<32x96xbf16>
    %cst = arith.constant dense<0.000000e+00> : vector<8x96xf32>
    %3 = tpu.matmul %1, %2, %cst {dimension_numbers = #tpu.dot_dimension_numbers<[1], [0], [0], [1], [0, 0, 1, 1], [], []>} : vector<8x32xbf16>, vector<32x96xbf16>, vector<8x96xf32> -> vector<8x96xf32>
    %c0_4 = arith.constant 0 : index
    %c0_5 = arith.constant 0 : index
    %4 = vector.load %arg3[%c0_4, %c0_5] : memref<1x96xf32, #tpu.memory_space<vmem>>, vector<1x96xf32>
    %5 = vector.broadcast %4 : vector<1x96xf32> to vector<8x96xf32>
    %6 = arith.addf %3, %5 : vector<8x96xf32>
    %7 = arith.truncf %6 : vector<8x96xf32> to vector<8x96xbf16>
    %c0_6 = arith.constant 0 : index
    %c0_7 = arith.constant 0 : index
    %c0_8 = arith.constant 0 : index
    %8 = vector.load %arg4[%c0_6, %c0_7, %c0_8] : memref<1x1x8xf32, #tpu.memory_space<vmem>>, vector<1x1x8xf32>
    %9 = vector.shape_cast %8 : vector<1x1x8xf32> to vector<1x8xf32>
    %10 = vector.extract_strided_slice %7 {offsets = [0, 0], sizes = [8, 16], strides = [1, 1]} : vector<8x96xbf16> to vector<8x16xbf16>
    %11 = vector.extract_strided_slice %7 {offsets = [0, 32], sizes = [8, 16], strides = [1, 1]} : vector<8x96xbf16> to vector<8x16xbf16>
    %12 = vector.extract_strided_slice %7 {offsets = [0, 64], sizes = [8, 16], strides = [1, 1]} : vector<8x96xbf16> to vector<8x16xbf16>
    %cst_9 = arith.constant dense<0.000000e+00> : vector<8x8xf32>
    %13 = tpu.matmul %10, %11, %cst_9 {dimension_numbers = #tpu.dot_dimension_numbers<[1], [1], [0], [0], [0, 0, 1, 0], [], []>} : vector<8x16xbf16>, vector<8x16xbf16>, vector<8x8xf32> -> vector<8x8xf32>
    %cst_10 = arith.constant 2.500000e-01 : f32
    %14 = vector.broadcast %cst_10 : f32 to vector<8x8xf32>
    %15 = arith.mulf %13, %14 : vector<8x8xf32>
    %16 = vector.broadcast %9 : vector<1x8xf32> to vector<8x8xf32>
    %17 = arith.addf %15, %16 : vector<8x8xf32>
    %cst_11 = arith.constant dense<0xFF800000> : vector<8xf32>
    %18 = vector.multi_reduction <maximumf>, %17, %cst_11 [1] : vector<8x8xf32> to vector<8xf32>
    %19 = vector.shape_cast %18 : vector<8xf32> to vector<8x1xf32>
    %20 = vector.broadcast %19 : vector<8x1xf32> to vector<8x8xf32>
    %21 = arith.subf %17, %20 : vector<8x8xf32>
    %22 = math.exp %21 : vector<8x8xf32>
    %cst_12 = arith.constant dense<0.000000e+00> : vector<8xf32>
    %23 = vector.multi_reduction <add>, %22, %cst_12 [1] : vector<8x8xf32> to vector<8xf32>
    %24 = vector.shape_cast %23 : vector<8xf32> to vector<8x1xf32>
    %25 = tpu.reciprocal %24 {approx = true} : vector<8x1xf32> -> vector<8x1xf32>
    %26 = vector.broadcast %25 : vector<8x1xf32> to vector<8x8xf32>
    %27 = arith.mulf %22, %26 : vector<8x8xf32>
    %28 = arith.truncf %27 : vector<8x8xf32> to vector<8x8xbf16>
    %cst_13 = arith.constant dense<0.000000e+00> : vector<8x16xf32>
    %29 = tpu.matmul %28, %12, %cst_13 {dimension_numbers = #tpu.dot_dimension_numbers<[1], [0], [0], [1], [0, 0, 1, 1], [], []>} : vector<8x8xbf16>, vector<8x16xbf16>, vector<8x16xf32> -> vector<8x16xf32>
    %30 = arith.truncf %29 : vector<8x16xf32> to vector<8x16xbf16>
    %31 = vector.extract_strided_slice %7 {offsets = [0, 16], sizes = [8, 16], strides = [1, 1]} : vector<8x96xbf16> to vector<8x16xbf16>
    %32 = vector.extract_strided_slice %7 {offsets = [0, 48], sizes = [8, 16], strides = [1, 1]} : vector<8x96xbf16> to vector<8x16xbf16>
    %33 = vector.extract_strided_slice %7 {offsets = [0, 80], sizes = [8, 16], strides = [1, 1]} : vector<8x96xbf16> to vector<8x16xbf16>
    %cst_14 = arith.constant dense<0.000000e+00> : vector<8x8xf32>
    %34 = tpu.matmul %31, %32, %cst_14 {dimension_numbers = #tpu.dot_dimension_numbers<[1], [1], [0], [0], [0, 0, 1, 0], [], []>} : vector<8x16xbf16>, vector<8x16xbf16>, vector<8x8xf32> -> vector<8x8xf32>
    %cst_15 = arith.constant 2.500000e-01 : f32
    %35 = vector.broadcast %cst_15 : f32 to vector<8x8xf32>
    %36 = arith.mulf %34, %35 : vector<8x8xf32>
    %37 = vector.broadcast %9 : vector<1x8xf32> to vector<8x8xf32>
    %38 = arith.addf %36, %37 : vector<8x8xf32>
    %cst_16 = arith.constant dense<0xFF800000> : vector<8xf32>
    %39 = vector.multi_reduction <maximumf>, %38, %cst_16 [1] : vector<8x8xf32> to vector<8xf32>
    %40 = vector.shape_cast %39 : vector<8xf32> to vector<8x1xf32>
    %41 = vector.broadcast %40 : vector<8x1xf32> to vector<8x8xf32>
    %42 = arith.subf %38, %41 : vector<8x8xf32>
    %43 = math.exp %42 : vector<8x8xf32>
    %cst_17 = arith.constant dense<0.000000e+00> : vector<8xf32>
    %44 = vector.multi_reduction <add>, %43, %cst_17 [1] : vector<8x8xf32> to vector<8xf32>
    %45 = vector.shape_cast %44 : vector<8xf32> to vector<8x1xf32>
    %46 = tpu.reciprocal %45 {approx = true} : vector<8x1xf32> -> vector<8x1xf32>
    %47 = vector.broadcast %46 : vector<8x1xf32> to vector<8x8xf32>
    %48 = arith.mulf %43, %47 : vector<8x8xf32>
    %49 = arith.truncf %48 : vector<8x8xf32> to vector<8x8xbf16>
    %cst_18 = arith.constant dense<0.000000e+00> : vector<8x16xf32>
    %50 = tpu.matmul %49, %33, %cst_18 {dimension_numbers = #tpu.dot_dimension_numbers<[1], [0], [0], [1], [0, 0, 1, 1], [], []>} : vector<8x8xbf16>, vector<8x16xbf16>, vector<8x16xf32> -> vector<8x16xf32>
    %51 = arith.truncf %50 : vector<8x16xf32> to vector<8x16xbf16>
    %52 = tpu.concatenate %30, %51 in 1 : vector<8x16xbf16>, vector<8x16xbf16> -> vector<8x32xbf16>
    %c0_19 = arith.constant 0 : index
    %c0_20 = arith.constant 0 : index
    %53 = vector.load %arg5[%c0_19, %c0_20] : memref<32x32xbf16, #tpu.memory_space<vmem>>, vector<32x32xbf16>
    %cst_21 = arith.constant dense<0.000000e+00> : vector<8x32xf32>
    %54 = tpu.matmul %52, %53, %cst_21 {dimension_numbers = #tpu.dot_dimension_numbers<[1], [0], [0], [1], [0, 0, 1, 1], [], []>} : vector<8x32xbf16>, vector<32x32xbf16>, vector<8x32xf32> -> vector<8x32xf32>
    %c0_22 = arith.constant 0 : index
    %c0_23 = arith.constant 0 : index
    %55 = vector.load %arg6[%c0_22, %c0_23] : memref<1x32xf32, #tpu.memory_space<vmem>>, vector<1x32xf32>
    %56 = vector.broadcast %55 : vector<1x32xf32> to vector<8x32xf32>
    %57 = arith.addf %54, %56 : vector<8x32xf32>
    %c0_24 = arith.constant 0 : index
    %c0_25 = arith.constant 0 : index
    %c0_26 = arith.constant 0 : index
    %58 = vector.load %arg1[%c0_24, %c0_25, %c0_26] : memref<1x8x32xbf16, #tpu.memory_space<vmem>>, vector<1x8x32xbf16>
    %59 = vector.shape_cast %58 : vector<1x8x32xbf16> to vector<8x32xbf16>
    %60 = arith.extf %59 : vector<8x32xbf16> to vector<8x32xf32>
    %61 = arith.addf %57, %60 : vector<8x32xf32>
    %c0_27 = arith.constant 0 : index
    %c0_28 = arith.constant 0 : index
    %62 = vector.load %arg7[%c0_27, %c0_28] : memref<1x32xf32, #tpu.memory_space<vmem>>, vector<1x32xf32>
    %c0_29 = arith.constant 0 : index
    %c0_30 = arith.constant 0 : index
    %63 = vector.load %arg8[%c0_29, %c0_30] : memref<1x32xf32, #tpu.memory_space<vmem>>, vector<1x32xf32>
    %cst_31 = arith.constant dense<0.000000e+00> : vector<8xf32>
    %64 = vector.multi_reduction <add>, %61, %cst_31 [1] : vector<8x32xf32> to vector<8xf32>
    %65 = vector.shape_cast %64 : vector<8xf32> to vector<8x1xf32>
    %cst_32 = arith.constant 3.200000e+01 : f32
    %66 = vector.broadcast %cst_32 : f32 to vector<8x1xf32>
    %67 = arith.divf %65, %66 : vector<8x1xf32>
    %68 = vector.broadcast %67 : vector<8x1xf32> to vector<8x32xf32>
    %69 = arith.subf %61, %68 : vector<8x32xf32>
    %70 = arith.mulf %69, %69 : vector<8x32xf32>
    %cst_33 = arith.constant dense<0.000000e+00> : vector<8xf32>
    %71 = vector.multi_reduction <add>, %70, %cst_33 [1] : vector<8x32xf32> to vector<8xf32>
    %72 = vector.shape_cast %71 : vector<8xf32> to vector<8x1xf32>
    %cst_34 = arith.constant 3.200000e+01 : f32
    %73 = vector.broadcast %cst_34 : f32 to vector<8x1xf32>
    %74 = arith.divf %72, %73 : vector<8x1xf32>
    %cst_35 = arith.constant 9.99999996E-13 : f32
    %75 = vector.broadcast %cst_35 : f32 to vector<8x1xf32>
    %76 = arith.addf %74, %75 : vector<8x1xf32>
    %77 = math.rsqrt %76 : vector<8x1xf32>
    %78 = vector.broadcast %77 : vector<8x1xf32> to vector<8x32xf32>
    %79 = arith.mulf %69, %78 : vector<8x32xf32>
    %80 = vector.broadcast %62 : vector<1x32xf32> to vector<8x32xf32>
    %81 = arith.mulf %79, %80 : vector<8x32xf32>
    %82 = vector.broadcast %63 : vector<1x32xf32> to vector<8x32xf32>
    %83 = arith.addf %81, %82 : vector<8x32xf32>
    %84 = arith.truncf %83 : vector<8x32xf32> to vector<8x32xbf16>
    %c0_36 = arith.constant 0 : index
    %c0_37 = arith.constant 0 : index
    %c0_38 = arith.constant 0 : index
    %85 = vector.load %arg9[%c0_36, %c0_37, %c0_38] : memref<1x8x32xbf16, #tpu.memory_space<vmem>>, vector<1x8x32xbf16>
    %86 = vector.shape_cast %85 : vector<1x8x32xbf16> to vector<8x32xbf16>
    %87 = vector.shape_cast %84 : vector<8x32xbf16> to vector<1x8x32xbf16>
    tpu.vector_store %arg9[%c0_36, %c0_37, %c0_38], %87 {strides = array<i32>} : memref<1x8x32xbf16, #tpu.memory_space<vmem>>, vector<1x8x32xbf16>,
    return
  }
  func.func @transform_0(%arg0: i32) -> (i32, i32, i32) {
    %c0_i32 = arith.constant 0 : i32
    %c0_i32_0 = arith.constant 0 : i32
    %c0_i32_1 = arith.constant 0 : i32
    return %arg0, %c0_i32, %c0_i32_0 : i32, i32, i32
  }
  func.func @transform_1(%arg0: i32) -> (i32, i32) {
    %c0_i32 = arith.constant 0 : i32
    %c0_i32_0 = arith.constant 0 : i32
    %c0_i32_1 = arith.constant 0 : i32
    return %c0_i32, %c0_i32_0 : i32, i32
  }
  func.func @transform_2(%arg0: i32) -> (i32, i32) {
    %c0_i32 = arith.constant 0 : i32
    %c0_i32_0 = arith.constant 0 : i32
    %c0_i32_1 = arith.constant 0 : i32
    return %c0_i32, %c0_i32_0 : i32, i32
  }
  func.func @transform_3(%arg0: i32) -> (i32, i32, i32) {
    %c0_i32 = arith.constant 0 : i32
    %c0_i32_0 = arith.constant 0 : i32
    %c0_i32_1 = arith.constant 0 : i32
    return %arg0, %c0_i32, %c0_i32_0 : i32, i32, i32
  }
  func.func @transform_4(%arg0: i32) -> (i32, i32) {
    %c0_i32 = arith.constant 0 : i32
    %c0_i32_0 = arith.constant 0 : i32
    %c0_i32_1 = arith.constant 0 : i32
    return %c0_i32, %c0_i32_0 : i32, i32
  }
  func.func @transform_5(%arg0: i32) -> (i32, i32) {
    %c0_i32 = arith.constant 0 : i32
    %c0_i32_0 = arith.constant 0 : i32
    %c0_i32_1 = arith.constant 0 : i32
    return %c0_i32, %c0_i32_0 : i32, i32
  }
  func.func @transform_6(%arg0: i32) -> (i32, i32) {
    %c0_i32 = arith.constant 0 : i32
    %c0_i32_0 = arith.constant 0 : i32
    %c0_i32_1 = arith.constant 0 : i32
    return %c0_i32, %c0_i32_0 : i32, i32
  }
  func.func @transform_7(%arg0: i32) -> (i32, i32) {
    %c0_i32 = arith.constant 0 : i32
    %c0_i32_0 = arith.constant 0 : i32
    %c0_i32_1 = arith.constant 0 : i32
    return %c0_i32, %c0_i32_0 : i32, i32
  }
  func.func @transform_8(%arg0: i32) -> (i32, i32, i32) {
    %c0_i32 = arith.constant 0 : i32
    %c0_i32_0 = arith.constant 0 : i32
    %c0_i32_1 = arith.constant 0 : i32
    return %arg0, %c0_i32, %c0_i32_0 : i32, i32, i32
  }
}

module attributes {stable_mosaic.version = 11 : i64} {
  func.func @_ffn_ln_kernel(%arg0: i32, %arg1: memref<16x32xbf16, #tpu.memory_space<vmem>>, %arg2: memref<32x64xbf16, #tpu.memory_space<vmem>>, %arg3: memref<1x64xf32, #tpu.memory_space<vmem>>, %arg4: memref<64x32xbf16, #tpu.memory_space<vmem>>, %arg5: memref<1x32xf32, #tpu.memory_space<vmem>>, %arg6: memref<1x32xf32, #tpu.memory_space<vmem>>, %arg7: memref<1x32xf32, #tpu.memory_space<vmem>>, %arg8: memref<16x32xbf16, #tpu.memory_space<vmem>>) attributes {dimension_semantics = [#tpu.dimension_semantics<parallel>], iteration_bounds = array<i64: 1>, scalar_prefetch = 0 : i64, scratch_operands = 0 : i64, tpu.core_type = #tpu.core_type<tc>, window_params = [{transform_indices = @transform_0, window_bounds = array<i64: 16, 32>}, {pipeline_mode = #tpu.pipeline_mode<synchronous>, transform_indices = @transform_1, window_bounds = array<i64: 32, 64>}, {pipeline_mode = #tpu.pipeline_mode<synchronous>, transform_indices = @transform_2, window_bounds = array<i64: 1, 64>}, {pipeline_mode = #tpu.pipeline_mode<synchronous>, transform_indices = @transform_3, window_bounds = array<i64: 64, 32>}, {pipeline_mode = #tpu.pipeline_mode<synchronous>, transform_indices = @transform_4, window_bounds = array<i64: 1, 32>}, {pipeline_mode = #tpu.pipeline_mode<synchronous>, transform_indices = @transform_5, window_bounds = array<i64: 1, 32>}, {pipeline_mode = #tpu.pipeline_mode<synchronous>, transform_indices = @transform_6, window_bounds = array<i64: 1, 32>}, {transform_indices = @transform_7, window_bounds = array<i64: 16, 32>}]} {
    %c0 = arith.constant 0 : index
    %c0_0 = arith.constant 0 : index
    %0 = vector.load %arg1[%c0, %c0_0] : memref<16x32xbf16, #tpu.memory_space<vmem>>, vector<16x32xbf16>
    %c0_1 = arith.constant 0 : index
    %c0_2 = arith.constant 0 : index
    %1 = vector.load %arg2[%c0_1, %c0_2] : memref<32x64xbf16, #tpu.memory_space<vmem>>, vector<32x64xbf16>
    %cst = arith.constant dense<0.000000e+00> : vector<16x64xf32>
    %2 = tpu.matmul %0, %1, %cst {dimension_numbers = #tpu.dot_dimension_numbers<[1], [0], [0], [1], [0, 0, 1, 1], [], []>} : vector<16x32xbf16>, vector<32x64xbf16>, vector<16x64xf32> -> vector<16x64xf32>
    %c0_3 = arith.constant 0 : index
    %c0_4 = arith.constant 0 : index
    %3 = vector.load %arg3[%c0_3, %c0_4] : memref<1x64xf32, #tpu.memory_space<vmem>>, vector<1x64xf32>
    %4 = vector.broadcast %3 : vector<1x64xf32> to vector<16x64xf32>
    %5 = arith.addf %2, %4 : vector<16x64xf32>
    %cst_5 = arith.constant 5.000000e-01 : f32
    %6 = vector.broadcast %cst_5 : f32 to vector<16x64xf32>
    %7 = arith.mulf %6, %5 : vector<16x64xf32>
    %cst_6 = arith.constant 4.471500e-02 : f32
    %8 = vector.broadcast %cst_6 : f32 to vector<16x64xf32>
    %9 = arith.mulf %8, %5 : vector<16x64xf32>
    %10 = arith.mulf %9, %5 : vector<16x64xf32>
    %11 = arith.mulf %10, %5 : vector<16x64xf32>
    %12 = arith.addf %5, %11 : vector<16x64xf32>
    %cst_7 = arith.constant 0.797884583 : f32
    %13 = vector.broadcast %cst_7 : f32 to vector<16x64xf32>
    %14 = arith.mulf %13, %12 : vector<16x64xf32>
    %15 = math.tanh %14 : vector<16x64xf32>
    %cst_8 = arith.constant 1.000000e+00 : f32
    %16 = vector.broadcast %cst_8 : f32 to vector<16x64xf32>
    %17 = arith.addf %16, %15 : vector<16x64xf32>
    %18 = arith.mulf %7, %17 : vector<16x64xf32>
    %19 = arith.truncf %18 : vector<16x64xf32> to vector<16x64xbf16>
    %c0_9 = arith.constant 0 : index
    %c0_10 = arith.constant 0 : index
    %20 = vector.load %arg4[%c0_9, %c0_10] : memref<64x32xbf16, #tpu.memory_space<vmem>>, vector<64x32xbf16>
    %cst_11 = arith.constant dense<0.000000e+00> : vector<16x32xf32>
    %21 = tpu.matmul %19, %20, %cst_11 {dimension_numbers = #tpu.dot_dimension_numbers<[1], [0], [0], [1], [0, 0, 1, 1], [], []>} : vector<16x64xbf16>, vector<64x32xbf16>, vector<16x32xf32> -> vector<16x32xf32>
    %c0_12 = arith.constant 0 : index
    %c0_13 = arith.constant 0 : index
    %22 = vector.load %arg5[%c0_12, %c0_13] : memref<1x32xf32, #tpu.memory_space<vmem>>, vector<1x32xf32>
    %23 = vector.broadcast %22 : vector<1x32xf32> to vector<16x32xf32>
    %24 = arith.addf %21, %23 : vector<16x32xf32>
    %c0_14 = arith.constant 0 : index
    %c0_15 = arith.constant 0 : index
    %25 = vector.load %arg1[%c0_14, %c0_15] : memref<16x32xbf16, #tpu.memory_space<vmem>>, vector<16x32xbf16>
    %26 = arith.extf %25 : vector<16x32xbf16> to vector<16x32xf32>
    %27 = arith.addf %24, %26 : vector<16x32xf32>
    %c0_16 = arith.constant 0 : index
    %c0_17 = arith.constant 0 : index
    %28 = vector.load %arg6[%c0_16, %c0_17] : memref<1x32xf32, #tpu.memory_space<vmem>>, vector<1x32xf32>
    %c0_18 = arith.constant 0 : index
    %c0_19 = arith.constant 0 : index
    %29 = vector.load %arg7[%c0_18, %c0_19] : memref<1x32xf32, #tpu.memory_space<vmem>>, vector<1x32xf32>
    %cst_20 = arith.constant dense<0.000000e+00> : vector<16xf32>
    %30 = vector.multi_reduction <add>, %27, %cst_20 [1] : vector<16x32xf32> to vector<16xf32>
    %31 = vector.shape_cast %30 : vector<16xf32> to vector<16x1xf32>
    %cst_21 = arith.constant 3.200000e+01 : f32
    %32 = vector.broadcast %cst_21 : f32 to vector<16x1xf32>
    %33 = arith.divf %31, %32 : vector<16x1xf32>
    %34 = vector.broadcast %33 : vector<16x1xf32> to vector<16x32xf32>
    %35 = arith.subf %27, %34 : vector<16x32xf32>
    %36 = arith.mulf %35, %35 : vector<16x32xf32>
    %cst_22 = arith.constant dense<0.000000e+00> : vector<16xf32>
    %37 = vector.multi_reduction <add>, %36, %cst_22 [1] : vector<16x32xf32> to vector<16xf32>
    %38 = vector.shape_cast %37 : vector<16xf32> to vector<16x1xf32>
    %cst_23 = arith.constant 3.200000e+01 : f32
    %39 = vector.broadcast %cst_23 : f32 to vector<16x1xf32>
    %40 = arith.divf %38, %39 : vector<16x1xf32>
    %cst_24 = arith.constant 9.99999996E-13 : f32
    %41 = vector.broadcast %cst_24 : f32 to vector<16x1xf32>
    %42 = arith.addf %40, %41 : vector<16x1xf32>
    %43 = math.rsqrt %42 : vector<16x1xf32>
    %44 = vector.broadcast %43 : vector<16x1xf32> to vector<16x32xf32>
    %45 = arith.mulf %35, %44 : vector<16x32xf32>
    %46 = vector.broadcast %28 : vector<1x32xf32> to vector<16x32xf32>
    %47 = arith.mulf %45, %46 : vector<16x32xf32>
    %48 = vector.broadcast %29 : vector<1x32xf32> to vector<16x32xf32>
    %49 = arith.addf %47, %48 : vector<16x32xf32>
    %50 = arith.truncf %49 : vector<16x32xf32> to vector<16x32xbf16>
    %c0_25 = arith.constant 0 : index
    %c0_26 = arith.constant 0 : index
    %51 = vector.load %arg8[%c0_25, %c0_26] : memref<16x32xbf16, #tpu.memory_space<vmem>>, vector<16x32xbf16>
    tpu.vector_store %arg8[%c0_25, %c0_26], %50 {strides = array<i32>} : memref<16x32xbf16, #tpu.memory_space<vmem>>, vector<16x32xbf16>,
    return
  }
  func.func @transform_0(%arg0: i32) -> (i32, i32) {
    %c0_i32 = arith.constant 0 : i32
    %c0_i32_0 = arith.constant 0 : i32
    return %arg0, %c0_i32 : i32, i32
  }
  func.func @transform_1(%arg0: i32) -> (i32, i32) {
    %c0_i32 = arith.constant 0 : i32
    %c0_i32_0 = arith.constant 0 : i32
    %c0_i32_1 = arith.constant 0 : i32
    return %c0_i32, %c0_i32_0 : i32, i32
  }
  func.func @transform_2(%arg0: i32) -> (i32, i32) {
    %c0_i32 = arith.constant 0 : i32
    %c0_i32_0 = arith.constant 0 : i32
    %c0_i32_1 = arith.constant 0 : i32
    return %c0_i32, %c0_i32_0 : i32, i32
  }
  func.func @transform_3(%arg0: i32) -> (i32, i32) {
    %c0_i32 = arith.constant 0 : i32
    %c0_i32_0 = arith.constant 0 : i32
    %c0_i32_1 = arith.constant 0 : i32
    return %c0_i32, %c0_i32_0 : i32, i32
  }
  func.func @transform_4(%arg0: i32) -> (i32, i32) {
    %c0_i32 = arith.constant 0 : i32
    %c0_i32_0 = arith.constant 0 : i32
    %c0_i32_1 = arith.constant 0 : i32
    return %c0_i32, %c0_i32_0 : i32, i32
  }
  func.func @transform_5(%arg0: i32) -> (i32, i32) {
    %c0_i32 = arith.constant 0 : i32
    %c0_i32_0 = arith.constant 0 : i32
    %c0_i32_1 = arith.constant 0 : i32
    return %c0_i32, %c0_i32_0 : i32, i32
  }
  func.func @transform_6(%arg0: i32) -> (i32, i32) {
    %c0_i32 = arith.constant 0 : i32
    %c0_i32_0 = arith.constant 0 : i32
    %c0_i32_1 = arith.constant 0 : i32
    return %c0_i32, %c0_i32_0 : i32, i32
  }
  func.func @transform_7(%arg0: i32) -> (i32, i32) {
    %c0_i32 = arith.constant 0 : i32
    %c0_i32_0 = arith.constant 0 : i32
    return %arg0, %c0_i32 : i32, i32
  }
}

</mosaic_0001>

<llo_original>
// kernel: rubert_lin_text_forward.5
$region0: #{rubert_lin_text_forward.5}
  #allocation0 [shape = 'u32[]', space=smem, size = 0x4, offset = 0x4, fixed_abs, tag = 'smem constant byte address 0x4 - core index']
  #allocation1 [shape = 'u32[144,128]{1,0:T(1,128)}', space=vmem, size = 0x12000, scoped, tag = 'internal scratch']
  %s0 = inlined_call_operand.vmem [shape: f32[16,32], index: 0, kind: input, shape index: {}]
  %s1 = inlined_call_operand.vmem [shape: f32[1,32], index: 1, kind: input, shape index: {}]
  %s2 = inlined_call_operand.vmem [shape: f32[1,32], index: 2, kind: input, shape index: {}]
  %s3 = inlined_call_operand.vmem [shape: bf16[16,32], index: 3, kind: output, shape index: {}]
  %s4 = sld [smem:[#allocation0]]
  $region22: #{rubert_lin_text_forward.5} parent=0
    _
  %s6 = ssub.s32 1, %s4
  %s7 = scalar_select 0, %s6, %s4
  // Predicated region
  $region2: #{rubert_lin_text_forward.5} parent=0 // pred_check
    _
  $region3: #{rubert_lin_text_forward.5} parent=0 // pred_check_branch
    %9 = sbr.rel (0) target = $region5
  $region4: #{rubert_lin_text_forward.5} parent=0 // pred_region
    _
  $region5: #{rubert_lin_text_forward.5} parent=0 // pred_fallthru
    _
  // Predicated region
  $region6: #{rubert_lin_text_forward.5} parent=0 // pred_check
    _
  $region7: #{rubert_lin_text_forward.5} parent=0 // pred_check_branch
    %11 = sbr.rel (0) target = $region9
  $region8: #{rubert_lin_text_forward.5} parent=0 // pred_region
    _
  $region9: #{rubert_lin_text_forward.5} parent=0 // pred_fallthru
    _
  // Predicated region
  $region10: #{rubert_lin_text_forward.5} parent=0 // pred_check
    _
  $region11: #{rubert_lin_text_forward.5} parent=0 // pred_check_branch
    %13 = sbr.rel (0) target = $region13
  $region12: #{rubert_lin_text_forward.5} parent=0 // pred_region
    _
  $region13: #{rubert_lin_text_forward.5} parent=0 // pred_fallthru
    _
  %v14 = vld [vmem:[%s0] sm:$0xff]
  %v15 = vld [vmem:[%s0 + $0x8] sm:$0xff]
  %v16 = vld [vmem:[%s1] sm:$0x1]
  %v17 = vld [vmem:[%s2] sm:$0x1]
  %vm18 = vcmask 261120
  %v19 = vsel %vm18, %v14, 0.0
  %20 = vadd.xlane.f32.xlu0 %v19
  %v21 = vpop.xlane.xlu0 %20
  %v22 = vsel %vm18, %v15, 0.0
  %23 = vadd.xlane.f32.xlu0 %v22
  %v24 = vpop.xlane.xlu0 %23
  %v25 = vrcp.pop 32.0
  %v26 = vmul.f32 %v21, %v25
  %v27 = vmul.f32 %v24, %v25
  %v28 = vsub.f32 %v14, %v26
  %v29 = vsub.f32 %v15, %v27
  %v30 = vmul.f32 %v28, %v28
  %v31 = vmul.f32 %v29, %v29
  %v32 = vsel %vm18, %v30, 0.0
  %33 = vadd.xlane.f32.xlu0 %v32
  %v34 = vpop.xlane.xlu0 %33
  %v35 = vsel %vm18, %v31, 0.0
  %36 = vadd.xlane.f32.xlu0 %v35
  %v37 = vpop.xlane.xlu0 %36
  %v38 = vmul.f32 %v34, %v25
  %v39 = vmul.f32 %v37, %v25
  %v40 = vadd.f32 %v38, 1e-12
  %v41 = vadd.f32 %v39, 1e-12
  %v42 = vrsqrt.pop %v40
  %v43 = vrsqrt.pop %v41
  %v44 = vmul.f32 %v28, %v42
  %v45 = vmul.f32 %v29, %v43
  %v47 = vlaneseq
  %v48 = vshrl.u32 %v47, 7
  %v49 = vsub.s32 0, %v48
  %v50 = vrot.slane %v16, %v49
  %v52 = vmul.f32 %v44, %v50
  %v53 = vmul.f32 %v45, %v50
  %v55 = vlaneseq
  %v56 = vshrl.u32 %v55, 7
  %v57 = vsub.s32 0, %v56
  %v58 = vrot.slane %v17, %v57
  %v60 = vadd.f32 %v52, %v58
  %v61 = vadd.f32 %v53, %v58
  %v62 = vpack.c.bf16 %v61, %v60
  %v64 = vunpack.c.l.b16 %v62
  %v65 = vunpack.c.h.b16 %v62
  %v66 = vpack.c.b16 %v64, %v64
  %v67 = vpack.c.b16 %v65, %v65
  %vm70 = vcmask 257024
  %71 = vst.msk [vmem:[%s3] sm:$0xf] %vm70, %v66
  %72 = vst.msk [vmem:[%s3 + $0x4] sm:$0xf] %vm70, %v67
  // Predicated region
  $region14: #{rubert_lin_text_forward.5} parent=0 // pred_check
    _
  $region15: #{rubert_lin_text_forward.5} parent=0 // pred_check_branch
    %74 = sbr.rel (0) target = $region17
  $region16: #{rubert_lin_text_forward.5} parent=0 // pred_region
    _
  $region17: #{rubert_lin_text_forward.5} parent=0 // pred_fallthru
    _
  // Predicated region
  $region18: #{rubert_lin_text_forward.5} parent=0 // pred_check
    _
  $region19: #{rubert_lin_text_forward.5} parent=0 // pred_check_branch
    %76 = sbr.rel (0) target = $region21
  $region20: #{rubert_lin_text_forward.5} parent=0 // pred_region
    _
  $region21: #{rubert_lin_text_forward.5} parent=0 // pred_fallthru
    _

// kernel: rubert_lin_text_forward.7
$region0: #{rubert_lin_text_forward.7}
  #allocation0 [shape = 'u32[]', space=smem, size = 0x4, offset = 0x4, fixed_abs, tag = 'smem constant byte address 0x4 - core index']
  #allocation1 [shape = 'u32[144,128]{1,0:T(1,128)}', space=vmem, size = 0x12000, scoped, tag = 'internal scratch']
  %s0 = inlined_call_operand.vmem [shape: bf16[16,32], index: 0, kind: input, shape index: {}]
  %s1 = inlined_call_operand.vmem [shape: bf16[32,64], index: 1, kind: input, shape index: {}]
  %s2 = inlined_call_operand.vmem [shape: f32[1,64], index: 2, kind: input, shape index: {}]
  %s3 = inlined_call_operand.vmem [shape: bf16[64,32], index: 3, kind: input, shape index: {}]
  %s4 = inlined_call_operand.vmem [shape: f32[1,32], index: 4, kind: input, shape index: {}]
  %s5 = inlined_call_operand.vmem [shape: f32[1,32], index: 5, kind: input, shape index: {}]
  %s6 = inlined_call_operand.vmem [shape: f32[1,32], index: 6, kind: input, shape index: {}]
  %s7 = inlined_call_operand.vmem [shape: bf16[16,32], index: 7, kind: output, shape index: {}]
  %s8 = sld [smem:[#allocation0]]
  $region38: #{rubert_lin_text_forward.7} parent=0
    _
  %s10 = ssub.s32 1, %s8
  %s11 = scalar_select 0, %s10, %s8
  // Predicated region
  $region2: #{rubert_lin_text_forward.7} parent=0 // pred_check
    _
  $region3: #{rubert_lin_text_forward.7} parent=0 // pred_check_branch
    %13 = sbr.rel (0) target = $region5
  $region4: #{rubert_lin_text_forward.7} parent=0 // pred_region
    _
  $region5: #{rubert_lin_text_forward.7} parent=0 // pred_fallthru
    _
  // Predicated region
  $region6: #{rubert_lin_text_forward.7} parent=0 // pred_check
    _
  $region7: #{rubert_lin_text_forward.7} parent=0 // pred_check_branch
    %15 = sbr.rel (0) target = $region9
  $region8: #{rubert_lin_text_forward.7} parent=0 // pred_region
    _
  $region9: #{rubert_lin_text_forward.7} parent=0 // pred_fallthru
    _
  // Predicated region
  $region10: #{rubert_lin_text_forward.7} parent=0 // pred_check
    _
  $region11: #{rubert_lin_text_forward.7} parent=0 // pred_check_branch
    %17 = sbr.rel (0) target = $region13
  $region12: #{rubert_lin_text_forward.7} parent=0 // pred_region
    _
  $region13: #{rubert_lin_text_forward.7} parent=0 // pred_fallthru
    _
  // Predicated region
  $region14: #{rubert_lin_text_forward.7} parent=0 // pred_check
    _
  $region15: #{rubert_lin_text_forward.7} parent=0 // pred_check_branch
    %19 = sbr.rel (0) target = $region17
  $region16: #{rubert_lin_text_forward.7} parent=0 // pred_region
    _
  $region17: #{rubert_lin_text_forward.7} parent=0 // pred_fallthru
    _
  // Predicated region
  $region18: #{rubert_lin_text_forward.7} parent=0 // pred_check
    _
  $region19: #{rubert_lin_text_forward.7} parent=0 // pred_check_branch
    %21 = sbr.rel (0) target = $region21
  $region20: #{rubert_lin_text_forward.7} parent=0 // pred_region
    _
  $region21: #{rubert_lin_text_forward.7} parent=0 // pred_fallthru
    _
  // Predicated region
  $region22: #{rubert_lin_text_forward.7} parent=0 // pred_check
    _
  $region23: #{rubert_lin_text_forward.7} parent=0 // pred_check_branch
    %23 = sbr.rel (0) target = $region25
  $region24: #{rubert_lin_text_forward.7} parent=0 // pred_region
    _
  $region25: #{rubert_lin_text_forward.7} parent=0 // pred_fallthru
    _
  // Predicated region
  $region26: #{rubert_lin_text_forward.7} parent=0 // pred_check
    _
  $region27: #{rubert_lin_text_forward.7} parent=0 // pred_check_branch
    %25 = sbr.rel (0) target = $region29
  $region28: #{rubert_lin_text_forward.7} parent=0 // pred_region
    _
  $region29: #{rubert_lin_text_forward.7} parent=0 // pred_fallthru
    _
  %v27 = vld [vmem:[%s0] sm:$0xf]
  %v28 = vld [vmem:[%s0 + $0x4] sm:$0xf]
  %v29 = vld [vmem:[%s1] sm:$0xf]
  %v30 = vld [vmem:[%s1 + $0x4] sm:$0xf]
  %v31 = vld [vmem:[%s1 + $0x8] sm:$0xf]
  %v32 = vld [vmem:[%s1 + $0xc] sm:$0xf]
  %v33 = vld [vmem:[%s2] sm:$0x1]
  %v35 = vlaneseq
  %v36 = vshrl.u32 %v35, 7
  %v37 = vsub.s32 0, %v36
  %v38 = vrot.slane %v33, %v37
  %v42 = vunpack.c.l.b16 %v27
  %v43 = vunpack.c.l.b16 %v28
  %v44 = vpack.c.b16 %v43, %v42
  %v49 = vunpack.c.l.b16 %v29
  %v50 = vunpack.c.l.b16 %v30
  %v51 = vunpack.c.l.b16 %v31
  %v52 = vunpack.c.l.b16 %v32
  %v53 = vpack.c.b16 %v50, %v49
  %v54 = vpack.c.b16 %v52, %v51
  %vm57 = vcmask 261120
  %v59 = vsel %vm57, %v44, 0
  %61 = vmatprep.subr.bf16.mxu0 0
  %62 = vmatpush1.bf16.msra.mxu0 0
  %63 = vmatprep.subr.bf16.mxu0 0
  %64 = vmatpush1.bf16.msra.mxu0 0
  %65 = vmatprep.subr.bf16.mxu0 0
  %66 = vmatpush1.bf16.msra.mxu0 0
  %67 = vmatprep.subr.bf16.mxu0 0
  %68 = vmatpush1.bf16.msra.mxu0 0
  %69 = vmatprep.subr.bf16.mxu0 0
  %70 = vmatpush1.bf16.msra.mxu0 0
  %71 = vmatprep.subr.bf16.mxu0 0
  %72 = vmatpush1.bf16.msra.mxu0 0
  %73 = vmatprep.subr.bf16.mxu0 0
  %74 = vmatpush1.bf16.msra.mxu0 %v54
  %75 = vmatprep.subr.bf16.mxu0 0
  %76 = vmatpush1.bf16.msra.mxu0 %v53
  %77 = vmatprep.subr.bf16.mxu0 0
  %78 = vmatpush2.bf16.msra.mxu0 0
  %79 = vmatprep.subr.bf16.mxu0 0
  %80 = vmatpush2.bf16.msra.mxu0 0
  %81 = vmatprep.subr.bf16.mxu0 0
  %82 = vmatpush2.bf16.msra.mxu0 0
  %83 = vmatprep.subr.bf16.mxu0 0
  %84 = vmatpush2.bf16.msra.mxu0 0
  %85 = vmatprep.subr.bf16.mxu0 0
  %86 = vmatpush2.bf16.msra.mxu0 0
  %87 = vmatprep.subr.bf16.mxu0 0
  %88 = vmatpush2.bf16.msra.mxu0 0
  %89 = vmatprep.subr.bf16.mxu0 0
  %90 = vmatpush2.bf16.msra.mxu0 0
  %91 = vmatprep.subr.bf16.mxu0 0
  %92 = vmatpush2.bf16.msra.mxu0 0
  %93 = vmatprep.mubr.bf16.mxu0 0
  %94 = vmatmul.mubr.bf16.gmra.mxu0 %v59
  %v95 = vpop.f32.mrf.mxu0
  %v96 = vadd.f32 %v38, %v95
  %v97 = vpop.f32.mrf.mxu0
  %v98 = vpop.f32.mrf.mxu0
  %v99 = vadd.f32 %v38, %v98
  %v100 = vpop.f32.mrf.mxu0
  %101 = vdwg.mxu0
  %v102 = vmul.f32 %v96, 0.5
  %v103 = vmul.f32 %v99, 0.5
  %v104 = vmul.f32 %v96, 0.044715
  %v105 = vmul.f32 %v99, 0.044715
  %v106 = vmul.f32 %v104, %v96
  %v107 = vmul.f32 %v105, %v99
  %v108 = vmul.f32 %v106, %v96
  %v109 = vmul.f32 %v107, %v99
  %v110 = vadd.f32 %v96, %v108
  %v111 = vadd.f32 %v99, %v109
  %v112 = vmul.f32 %v110, 0.7978846
  %v113 = vmul.f32 %v111, 0.7978846
  %v114 = vtanh.pop %v112
  %v115 = vtanh.pop %v113
  %v116 = vadd.f32 %v114, 1.0
  %v117 = vadd.f32 %v115, 1.0
  %v118 = vmul.f32 %v102, %v116
  %v119 = vmul.f32 %v103, %v117
  %v120 = vpack.c.bf16 %v119, %v118
  %v121 = vld [vmem:[%s3] sm:$0xf]
  %v122 = vld [vmem:[%s3 + $0x4] sm:$0xf]
  %v123 = vld [vmem:[%s3 + $0x8] sm:$0xf]
  %v124 = vld [vmem:[%s3 + $0xc] sm:$0xf]
  %v125 = vld [vmem:[%s3 + $0x10] sm:$0xf]
  %v126 = vld [vmem:[%s3 + $0x14] sm:$0xf]
  %v127 = vld [vmem:[%s3 + $0x18] sm:$0xf]
  %v128 = vld [vmem:[%s3 + $0x1c] sm:$0xf]
  %v129 = vld [vmem:[%s4] sm:$0x1]
  %v131 = vlaneseq
  %v132 = vshrl.u32 %v131, 7
  %v133 = vsub.s32 0, %v132
  %v134 = vrot.slane %v129, %v133
  %v144 = vunpack.c.l.b16 %v121
  %v145 = vunpack.c.l.b16 %v122
  %v146 = vunpack.c.l.b16 %v123
  %v147 = vunpack.c.l.b16 %v124
  %v148 = vunpack.c.l.b16 %v125
  %v149 = vunpack.c.l.b16 %v126
  %v150 = vunpack.c.l.b16 %v127
  %v151 = vunpack.c.l.b16 %v128
  %v152 = vpack.c.b16 %v145, %v144
  %v153 = vpack.c.b16 %v147, %v146
  %v154 = vpack.c.b16 %v149, %v148
  %v155 = vpack.c.b16 %v151, %v150
  %vm160 = vcmask 523264
  %v162 = vsel %vm160, %v120, 0
  %164 = vmatprep.subr.bf16.mxu0 0
  %165 = vmatpush1.bf16.msra.mxu0 0
  %166 = vmatprep.subr.bf16.mxu0 0
  %167 = vmatpush1.bf16.msra.mxu0 0
  %168 = vmatprep.subr.bf16.mxu0 0
  %169 = vmatpush1.bf16.msra.mxu0 0
  %170 = vmatprep.subr.bf16.mxu0 0
  %171 = vmatpush1.bf16.msra.mxu0 0
  %172 = vmatprep.subr.bf16.mxu0 0
  %173 = vmatpush1.bf16.msra.mxu0 %v155
  %174 = vmatprep.subr.bf16.mxu0 0
  %175 = vmatpush1.bf16.msra.mxu0 %v154
  %176 = vmatprep.subr.bf16.mxu0 0
  %177 = vmatpush1.bf16.msra.mxu0 %v153
  %178 = vmatprep.subr.bf16.mxu0 0
  %179 = vmatpush1.bf16.msra.mxu0 %v152
  %180 = vmatprep.subr.bf16.mxu0 0
  %181 = vmatpush2.bf16.msra.mxu0 0
  %182 = vmatprep.subr.bf16.mxu0 0
  %183 = vmatpush2.bf16.msra.mxu0 0
  %184 = vmatprep.subr.bf16.mxu0 0
  %185 = vmatpush2.bf16.msra.mxu0 0
  %186 = vmatprep.subr.bf16.mxu0 0
  %187 = vmatpush2.bf16.msra.mxu0 0
  %188 = vmatprep.subr.bf16.mxu0 0
  %189 = vmatpush2.bf16.msra.mxu0 0
  %190 = vmatprep.subr.bf16.mxu0 0
  %191 = vmatpush2.bf16.msra.mxu0 0
  %192 = vmatprep.subr.bf16.mxu0 0
  %193 = vmatpush2.bf16.msra.mxu0 0
  %194 = vmatprep.subr.bf16.mxu0 0
  %195 = vmatpush2.bf16.msra.mxu0 0
  %196 = vmatprep.mubr.bf16.mxu0 0
  %197 = vmatmul.mubr.bf16.gmra.mxu0 %v162
  %v198 = vpop.f32.mrf.mxu0
  %v199 = vadd.f32 %v134, %v198
  %v200 = vpop.f32.mrf.mxu0
  %v201 = vpop.f32.mrf.mxu0
  %v202 = vadd.f32 %v134, %v201
  %v203 = vpop.f32.mrf.mxu0
  %204 = vdwg.mxu0
  %v205 = vunpack.c.l.bf16 %v27
  %v206 = vunpack.c.l.bf16 %v28
  %v207 = vadd.f32 %v199, %v205
  %v208 = vadd.f32 %v202, %v206
  %v209 = vld [vmem:[%s5] sm:$0x1]
  %v210 = vld [vmem:[%s6] sm:$0x1]
  %v211 = vsel %vm57, %v207, 0.0
  %212 = vadd.xlane.f32.xlu0 %v211
  %v213 = vpop.xlane.xlu0 %212
  %v214 = vsel %vm57, %v208, 0.0
  %215 = vadd.xlane.f32.xlu0 %v214
  %v216 = vpop.xlane.xlu0 %215
  %v217 = vrcp.pop 32.0
  %v218 = vmul.f32 %v213, %v217
  %v219 = vmul.f32 %v216, %v217
  %v220 = vsub.f32 %v207, %v218
  %v221 = vsub.f32 %v208, %v219
  %v222 = vmul.f32 %v220, %v220
  %v223 = vmul.f32 %v221, %v221
  %v224 = vsel %vm57, %v222, 0.0
  %225 = vadd.xlane.f32.xlu0 %v224
  %v226 = vpop.xlane.xlu0 %225
  %v227 = vsel %vm57, %v223, 0.0
  %228 = vadd.xlane.f32.xlu0 %v227
  %v229 = vpop.xlane.xlu0 %228
  %v230 = vmul.f32 %v226, %v217
  %v231 = vmul.f32 %v229, %v217
  %v232 = vadd.f32 %v230, 1e-12
  %v233 = vadd.f32 %v231, 1e-12
  %v234 = vrsqrt.pop %v232
  %v235 = vrsqrt.pop %v233
  %v236 = vmul.f32 %v220, %v234
  %v237 = vmul.f32 %v221, %v235
  %v239 = vlaneseq
  %v240 = vshrl.u32 %v239, 7
  %v241 = vsub.s32 0, %v240
  %v242 = vrot.slane %v209, %v241
  %v244 = vmul.f32 %v236, %v242
  %v245 = vmul.f32 %v237, %v242
  %v247 = vlaneseq
  %v248 = vshrl.u32 %v247, 7
  %v249 = vsub.s32 0, %v248
  %v250 = vrot.slane %v210, %v249
  %v252 = vadd.f32 %v244, %v250
  %v253 = vadd.f32 %v245, %v250
  %v254 = vpack.c.bf16 %v253, %v252
  %v256 = vunpack.c.l.b16 %v254
  %v257 = vunpack.c.h.b16 %v254
  %v258 = vpack.c.b16 %v256, %v256
  %v259 = vpack.c.b16 %v257, %v257
  %vm262 = vcmask 257024
  %263 = vst.msk [vmem:[%s7] sm:$0xf] %vm262, %v258
  %264 = vst.msk [vmem:[%s7 + $0x4] sm:$0xf] %vm262, %v259
  // Predicated region
  $region30: #{rubert_lin_text_forward.7} parent=0 // pred_check
    _
  $region31: #{rubert_lin_text_forward.7} parent=0 // pred_check_branch
    %266 = sbr.rel (0) target = $region33
  $region32: #{rubert_lin_text_forward.7} parent=0 // pred_region
    _
  $region33: #{rubert_lin_text_forward.7} parent=0 // pred_fallthru
    _
  // Predicated region
  $region34: #{rubert_lin_text_forward.7} parent=0 // pred_check
    _
  $region35: #{rubert_lin_text_forward.7} parent=0 // pred_check_branch
    %268 = sbr.rel (0) target = $region37
  $region36: #{rubert_lin_text_forward.7} parent=0 // pred_region
    _
  $region37: #{rubert_lin_text_forward.7} parent=0 // pred_fallthru
    _

// kernel: rubert_lin_text_forward.6
$region0: #{rubert_lin_text_forward.6}
  #allocation0 [shape = 'u32[]', space=smem, size = 0x4, offset = 0x4, fixed_abs, tag = 'smem constant byte address 0x4 - core index']
  #allocation1 [shape = 'u32[144,128]{1,0:T(1,128)}', space=vmem, size = 0x12000, scoped, tag = 'internal scratch']
  %s0 = inlined_call_operand.vmem [shape: bf16[2,8,32], index: 0, kind: input, shape index: {}]
  %s1 = inlined_call_operand.vmem [shape: bf16[32,96], index: 1, kind: input, shape index: {}]
  %s2 = inlined_call_operand.vmem [shape: f32[1,96], index: 2, kind: input, shape index: {}]
  %s3 = inlined_call_operand.vmem [shape: f32[2,1,8], index: 3, kind: input, shape index: {}]
  %s4 = inlined_call_operand.vmem [shape: bf16[32,32], index: 4, kind: input, shape index: {}]
  %s5 = inlined_call_operand.vmem [shape: f32[1,32], index: 5, kind: input, shape index: {}]
  %s6 = inlined_call_operand.vmem [shape: f32[1,32], index: 6, kind: input, shape index: {}]
  %s7 = inlined_call_operand.vmem [shape: f32[1,32], index: 7, kind: input, shape index: {}]
  %s8 = inlined_call_operand.vmem [shape: bf16[2,8,32], index: 8, kind: output, shape index: {}]
  %s9 = sld [smem:[#allocation0]]
  $region65: #{rubert_lin_text_forward.6} parent=0
    _
  %s11 = ssub.s32 1, %s9
  %s12 = scalar_select 0, %s11, %s9
  loop: start=0, step=1, limit=4
  $region2: #{rubert_lin_text_forward.6} parent=0 // loop_pre_header
    _
  $region3: #{rubert_lin_text_forward.6} parent=0 // loop_header
    %s14 = sphi 0, %s18
    %p15 = scmp.ge.s32.totalorder %s14, 4
    %s24 = sphi 0, %s26
    %s27 = sphi 0, %s24
    %s28 = sphi 0, %s27
    %s44 = sphi 0, %s28
    %s48 = sphi 0, %s48
    %s50 = sphi 0, %s48
    %s51 = sphi 0, %s50
    %s65 = sphi 0, %s51
    %s69 = sphi 0, %s69
    %s71 = sphi 0, %s69
    %s72 = sphi 0, %s71
    %s86 = sphi 0, %s72
    %s92 = sphi 0, %s94
    %s95 = sphi 0, %s92
    %s96 = sphi 0, %s95
    %s112 = sphi 0, %s96
    %s116 = sphi 0, %s116
    %s118 = sphi 0, %s116
    %s119 = sphi 0, %s118
    %s133 = sphi 0, %s119
    %s137 = sphi 0, %s137
    %s139 = sphi 0, %s137
    %s140 = sphi 0, %s139
    %s154 = sphi 0, %s140
    %s158 = sphi 0, %s158
    %s160 = sphi 0, %s158
    %s161 = sphi 0, %s160
    %s175 = sphi 0, %s161
    %s179 = sphi 0, %s179
    %s181 = sphi 0, %s179
    %s182 = sphi 0, %s181
    %s196 = sphi 0, %s182
    %s202 = sphi 0, %s204
    %s205 = sphi 0, %s202
    %s206 = sphi 0, %s205
    %s222 = sphi 0, %s206
  $region4: #{rubert_lin_text_forward.6} parent=0 // loop_header_branch
    %17 = sbr.rel (%p15) target = $region8
  $region5: #{rubert_lin_text_forward.6} parent=0 // loop_body
    %s19 = ssub.s32 %s14, 1
    %s20 = ssub.s32 %s14, 2
    %s21 = sadd.s32 %s14, 1
    %s22 = ssub.s32 %s14, %s21
    %p23 = scmp.eq.s32.totalorder %s22, 0
    %s25 = sadd.s32 %s24, 1
    %s26 = scalar_select %p23, %s24, %s25
    %p29 = pneg %p23
    %p30 = scmp.eq.s32.totalorder %s14, 1
    %p31 = por %p29, %p30
    %p32 = scmp.ne.s32.totalorder %s24, %s27
    %p33 = scmp.eq.s32.totalorder %s14, 0
    %p34 = por %p32, %p33
    %p35 = scmp.ne.s32.totalorder %s24, %s27
    %p36 = scmp.eq.s32.totalorder %s19, 1
    %p37 = por %p35, %p36
    %p38 = scmp.ne.s32.totalorder %s27, %s28
    %p39 = scmp.eq.s32.totalorder %s19, 0
    %p40 = por %p38, %p39
    %p41 = scmp.ne.s32.totalorder %s27, %s28
    %p42 = scmp.eq.s32.totalorder %s20, 1
    %p43 = por %p41, %p42
    %p45 = scmp.ne.s32.totalorder %s28, %s44
    %p46 = scmp.eq.s32.totalorder %s20, 0
    %p47 = por %p45, %p46
    %s49 = sadd.s32 %s48, 1
    %p52 = scmp.eq.s32.totalorder %s14, 1
    %p53 = scmp.ne.s32.totalorder %s48, %s50
    %p54 = scmp.eq.s32.totalorder %s14, 0
    %p55 = por %p53, %p54
    %p56 = scmp.ne.s32.totalorder %s48, %s50
    %p57 = scmp.eq.s32.totalorder %s19, 1
    %p58 = por %p56, %p57
    %p59 = scmp.ne.s32.totalorder %s50, %s51
    %p60 = scmp.eq.s32.totalorder %s19, 0
    %p61 = por %p59, %p60
    %p62 = scmp.ne.s32.totalorder %s50, %s51
    %p63 = scmp.eq.s32.totalorder %s20, 1
    %p64 = por %p62, %p63
    %p66 = scmp.ne.s32.totalorder %s51, %s65
    %p67 = scmp.eq.s32.totalorder %s20, 0
    %p68 = por %p66, %p67
    %s70 = sadd.s32 %s69, 1
    %p73 = scmp.eq.s32.totalorder %s14, 1
    %p74 = scmp.ne.s32.totalorder %s69, %s71
    %p75 = scmp.eq.s32.totalorder %s14, 0
    %p76 = por %p74, %p75
    %p77 = scmp.ne.s32.totalorder %s69, %s71
    %p78 = scmp.eq.s32.totalorder %s19, 1
    %p79 = por %p77, %p78
    %p80 = scmp.ne.s32.totalorder %s71, %s72
    %p81 = scmp.eq.s32.totalorder %s19, 0
    %p82 = por %p80, %p81
    %p83 = scmp.ne.s32.totalorder %s71, %s72
    %p84 = scmp.eq.s32.totalorder %s20, 1
    %p85 = por %p83, %p84
    %p87 = scmp.ne.s32.totalorder %s72, %s86
    %p88 = scmp.eq.s32.totalorder %s20, 0
    %p89 = por %p87, %p88
    %s90 = ssub.s32 %s14, %s21
    %p91 = scmp.eq.s32.totalorder %s90, 0
    %s93 = sadd.s32 %s92, 1
    %s94 = scalar_select %p91, %s92, %s93
    %p97 = pneg %p91
    %p98 = scmp.eq.s32.totalorder %s14, 1
    %p99 = por %p97, %p98
    %p100 = scmp.ne.s32.totalorder %s92, %s95
    %p101 = scmp.eq.s32.totalorder %s14, 0
    %p102 = por %p100, %p101
    %p103 = scmp.ne.s32.totalorder %s92, %s95
    %p104 = scmp.eq.s32.totalorder %s19, 1
    %p105 = por %p103, %p104
    %p106 = scmp.ne.s32.totalorder %s95, %s96
    %p107 = scmp.eq.s32.totalorder %s19, 0
    %p108 = por %p106, %p107
    %p109 = scmp.ne.s32.totalorder %s95, %s96
    %p110 = scmp.eq.s32.totalorder %s20, 1
    %p111 = por %p109, %p110
    %p113 = scmp.ne.s32.totalorder %s96, %s112
    %p114 = scmp.eq.s32.totalorder %s20, 0
    %p115 = por %p113, %p114
    %s117 = sadd.s32 %s116, 1
    %p120 = scmp.eq.s32.totalorder %s14, 1
    %p121 = scmp.ne.s32.totalorder %s116, %s118
    %p122 = scmp.eq.s32.totalorder %s14, 0
    %p123 = por %p121, %p122
    %p124 = scmp.ne.s32.totalorder %s116, %s118
    %p125 = scmp.eq.s32.totalorder %s19, 1
    %p126 = por %p124, %p125
    %p127 = scmp.ne.s32.totalorder %s118, %s119
    %p128 = scmp.eq.s32.totalorder %s19, 0
    %p129 = por %p127, %p128
    %p130 = scmp.ne.s32.totalorder %s118, %s119
    %p131 = scmp.eq.s32.totalorder %s20, 1
    %p132 = por %p130, %p131
    %p134 = scmp.ne.s32.totalorder %s119, %s133
    %p135 = scmp.eq.s32.totalorder %s20, 0
    %p136 = por %p134, %p135
    %s138 = sadd.s32 %s137, 1
    %p141 = scmp.eq.s32.totalorder %s14, 1
    %p142 = scmp.ne.s32.totalorder %s137, %s139
    %p143 = scmp.eq.s32.totalorder %s14, 0
    %p144 = por %p142, %p143
    %p145 = scmp.ne.s32.totalorder %s137, %s139
    %p146 = scmp.eq.s32.totalorder %s19, 1
    %p147 = por %p145, %p146
    %p148 = scmp.ne.s32.totalorder %s139, %s140
    %p149 = scmp.eq.s32.totalorder %s19, 0
    %p150 = por %p148, %p149
    %p151 = scmp.ne.s32.totalorder %s139, %s140
    %p152 = scmp.eq.s32.totalorder %s20, 1
    %p153 = por %p151, %p152
    %p155 = scmp.ne.s32.totalorder %s140, %s154
    %p156 = scmp.eq.s32.totalorder %s20, 0
    %p157 = por %p155, %p156
    %s159 = sadd.s32 %s158, 1
    %p162 = scmp.eq.s32.totalorder %s14, 1
    %p163 = scmp.ne.s32.totalorder %s158, %s160
    %p164 = scmp.eq.s32.totalorder %s14, 0
    %p165 = por %p163, %p164
    %p166 = scmp.ne.s32.totalorder %s158, %s160
    %p167 = scmp.eq.s32.totalorder %s19, 1
    %p168 = por %p166, %p167
    %p169 = scmp.ne.s32.totalorder %s160, %s161
    %p170 = scmp.eq.s32.totalorder %s19, 0
    %p171 = por %p169, %p170
    %p172 = scmp.ne.s32.totalorder %s160, %s161
    %p173 = scmp.eq.s32.totalorder %s20, 1
    %p174 = por %p172, %p173
    %p176 = scmp.ne.s32.totalorder %s161, %s175
    %p177 = scmp.eq.s32.totalorder %s20, 0
    %p178 = por %p176, %p177
    %s180 = sadd.s32 %s179, 1
    %p183 = scmp.eq.s32.totalorder %s14, 1
    %p184 = scmp.ne.s32.totalorder %s179, %s181
    %p185 = scmp.eq.s32.totalorder %s14, 0
    %p186 = por %p184, %p185
    %p187 = scmp.ne.s32.totalorder %s179, %s181
    %p188 = scmp.eq.s32.totalorder %s19, 1
    %p189 = por %p187, %p188
    %p190 = scmp.ne.s32.totalorder %s181, %s182
    %p191 = scmp.eq.s32.totalorder %s19, 0
    %p192 = por %p190, %p191
    %p193 = scmp.ne.s32.totalorder %s181, %s182
    %p194 = scmp.eq.s32.totalorder %s20, 1
    %p195 = por %p193, %p194
    %p197 = scmp.ne.s32.totalorder %s182, %s196
    %p198 = scmp.eq.s32.totalorder %s20, 0
    %p199 = por %p197, %p198
    %s200 = ssub.s32 %s14, %s21
    %p201 = scmp.eq.s32.totalorder %s200, 0
    %s203 = sadd.s32 %s202, 1
    %s204 = scalar_select %p201, %s202, %s203
    %p207 = pneg %p201
    %p208 = scmp.eq.s32.totalorder %s14, 1
    %p209 = por %p207, %p208
    %p210 = scmp.ne.s32.totalorder %s202, %s205
    %p211 = scmp.eq.s32.totalorder %s14, 0
    %p212 = por %p210, %p211
    %p213 = scmp.ne.s32.totalorder %s202, %s205
    %p214 = scmp.eq.s32.totalorder %s19, 1
    %p215 = por %p213, %p214
    %p216 = scmp.ne.s32.totalorder %s205, %s206
    %p217 = scmp.eq.s32.totalorder %s19, 0
    %p218 = por %p216, %p217
    %p219 = scmp.ne.s32.totalorder %s205, %s206
    %p220 = scmp.eq.s32.totalorder %s20, 1
    %p221 = por %p219, %p220
    %p223 = scmp.ne.s32.totalorder %s206, %s222
    %p224 = scmp.eq.s32.totalorder %s20, 0
    %p225 = por %p223, %p224
    %p226 = scmp.le.s32.totalorder 1, %s14
    %p227 = scmp.lt.s32.totalorder %s14, 3
    %p228 = pnand %p226, %p227
    %p229 = pneg %p228
    // Predicated region
    $region9: #{rubert_lin_text_forward.6} parent=5 // pred_check
      _
    $region10: #{rubert_lin_text_forward.6} parent=5 // pred_check_branch
      %231 = sbr.rel (%p228) target = $region12
    $region11: #{rubert_lin_text_forward.6} parent=5 // pred_region
      %s232 = ssub.s32 %s14, 1
      // Predicated region
      $region13: #{rubert_lin_text_forward.6} parent=11 // pred_check
        %p233 = pneg %p61
      $region14: #{rubert_lin_text_forward.6} parent=11 // pred_check_branch
        %235 = sbr.rel (%p233) target = $region16
      $region15: #{rubert_lin_text_forward.6} parent=11 // pred_region
        _
      $region16: #{rubert_lin_text_forward.6} parent=11 // pred_fallthru
        _
      // Predicated region
      $region17: #{rubert_lin_text_forward.6} parent=11 // pred_check
        %p236 = pneg %p82
      $region18: #{rubert_lin_text_forward.6} parent=11 // pred_check_branch
        %238 = sbr.rel (%p236) target = $region20
      $region19: #{rubert_lin_text_forward.6} parent=11 // pred_region
        _
      $region20: #{rubert_lin_text_forward.6} parent=11 // pred_fallthru
        _
      // Predicated region
      $region21: #{rubert_lin_text_forward.6} parent=11 // pred_check
        %p239 = pneg %p129
      $region22: #{rubert_lin_text_forward.6} parent=11 // pred_check_branch
        %241 = sbr.rel (%p239) target = $region24
      $region23: #{rubert_lin_text_forward.6} parent=11 // pred_region
        _
      $region24: #{rubert_lin_text_forward.6} parent=11 // pred_fallthru
        _
      // Predicated region
      $region25: #{rubert_lin_text_forward.6} parent=11 // pred_check
        %p242 = pneg %p150
      $region26: #{rubert_lin_text_forward.6} parent=11 // pred_check_branch
        %244 = sbr.rel (%p242) target = $region28
      $region27: #{rubert_lin_text_forward.6} parent=11 // pred_region
        _
      $region28: #{rubert_lin_text_forward.6} parent=11 // pred_fallthru
        _
      // Predicated region
      $region29: #{rubert_lin_text_forward.6} parent=11 // pred_check
        %p245 = pneg %p171
      $region30: #{rubert_lin_text_forward.6} parent=11 // pred_check_branch
        %247 = sbr.rel (%p245) target = $region32
      $region31: #{rubert_lin_text_forward.6} parent=11 // pred_region
        _
      $region32: #{rubert_lin_text_forward.6} parent=11 // pred_fallthru
        _
      // Predicated region
      $region33: #{rubert_lin_text_forward.6} parent=11 // pred_check
        %p248 = pneg %p192
      $region34: #{rubert_lin_text_forward.6} parent=11 // pred_check_branch
        %250 = sbr.rel (%p248) target = $region36
      $region35: #{rubert_lin_text_forward.6} parent=11 // pred_region
        _
      $region36: #{rubert_lin_text_forward.6} parent=11 // pred_fallthru
        _
    $region12: #{rubert_lin_text_forward.6} parent=5 // pred_fallthru
      _
    %p251 = scmp.lt.s32.totalorder %s14, 2
    // Predicated region
    $region37: #{rubert_lin_text_forward.6} parent=5 // pred_check
      %p252 = pneg %p251
    $region38: #{rubert_lin_text_forward.6} parent=5 // pred_check_branch
      %254 = sbr.rel (%p252) target = $region40
    $region39: #{rubert_lin_text_forward.6} parent=5 // pred_region
      // Predicated region
      $region41: #{rubert_lin_text_forward.6} parent=39 // pred_check
        %p255 = pneg %p34
      $region42: #{rubert_lin_text_forward.6} parent=39 // pred_check_branch
        %257 = sbr.rel (%p255) target = $region44
      $region43: #{rubert_lin_text_forward.6} parent=39 // pred_region
        %p258 = scmp.lt.s32.totalorder %s14, 1
        %s259 = scalar_select %p258, %s14, 1
        %s260 = smul.addr %s259, 4
        %s261 = scalar_lea.vmem %s0, %s260
      $region44: #{rubert_lin_text_forward.6} parent=39 // pred_fallthru
        _
      // Predicated region
      $region45: #{rubert_lin_text_forward.6} parent=39 // pred_check
        %p262 = pneg %p102
      $region46: #{rubert_lin_text_forward.6} parent=39 // pred_check_branch
        %264 = sbr.rel (%p262) target = $region48
      $region47: #{rubert_lin_text_forward.6} parent=39 // pred_region
        %p265 = scmp.lt.s32.totalorder %s14, 1
        %s266 = scalar_select %p265, %s14, 1
        %s267 = scalar_lea.vmem %s3, %s266
      $region48: #{rubert_lin_text_forward.6} parent=39 // pred_fallthru
        _
    $region40: #{rubert_lin_text_forward.6} parent=5 // pred_fallthru
      _
    %p268 = scmp.le.s32.totalorder 1, %s14
    %p269 = scmp.lt.s32.totalorder %s14, 3
    %p270 = pnand %p268, %p269
    %p271 = pneg %p270
    // Predicated region
    $region49: #{rubert_lin_text_forward.6} parent=5 // pred_check
      _
    $region50: #{rubert_lin_text_forward.6} parent=5 // pred_check_branch
      %273 = sbr.rel (%p270) target = $region52
    $region51: #{rubert_lin_text_forward.6} parent=5 // pred_region
      %s274 = ssub.s32 %s14, 1
      %p275 = scmp.lt.s32.totalorder %s19, 1
      %s276 = scalar_select %p275, %s19, 1
      %s277 = smul.addr %s276, 4
      %s278 = scalar_lea.vmem %s0, %s277
      %p279 = pneg %p40
      %p280 = pneg %p37
      %p281 = pneg %p61
      %p282 = pneg %p58
      %p283 = pneg %p82
      %p284 = pneg %p79
      %p285 = scmp.lt.s32.totalorder %s19, 1
      %s286 = scalar_select %p285, %s19, 1
      %s287 = scalar_lea.vmem %s3, %s286
      %p288 = pneg %p108
      %p289 = pneg %p105
      %p290 = pneg %p129
      %p291 = pneg %p126
      %p292 = pneg %p150
      %p293 = pneg %p147
      %p294 = pneg %p171
      %p295 = pneg %p168
      %p296 = pneg %p192
      %p297 = pneg %p189
      %p298 = pneg %p218
      %p299 = pneg %p215
      %p300 = scmp.lt.s32.totalorder %s19, 1
      %s301 = scalar_select %p300, %s19, 1
      %s302 = smul.addr %s301, 4
      %s303 = scalar_lea.vmem %s8, %s302
      %p304 = scmp.lt.s32.totalorder %s19, 1
      %s305 = scalar_select %p304, %s19, 1
      %s306 = smul.addr %s305, 4
      %s307 = scalar_lea.vmem %s0, %s306
      %p308 = scmp.lt.s32.totalorder %s19, 1
      %s309 = scalar_select %p308, %s19, 1
      %s310 = scalar_lea.vmem %s3, %s309
      %p311 = scmp.lt.s32.totalorder %s19, 1
      %s312 = scalar_select %p311, %s19, 1
      %s313 = smul.addr %s312, 4
      %s314 = scalar_lea.vmem %s8, %s313
      %v316 = vld [vmem:[%s307] sm:$0xf]
      %v317 = vld [vmem:[%s1] sm:$0xf]
      %v318 = vld [vmem:[%s1 + $0x4] sm:$0xf]
      %v319 = vld [vmem:[%s1 + $0x8] sm:$0xf]
      %v320 = vld [vmem:[%s1 + $0xc] sm:$0xf]
      %v321 = vld [vmem:[%s2] sm:$0x1]
      %v323 = vlaneseq
      %v324 = vshrl.u32 %v323, 7
      %v325 = vsub.s32 0, %v324
      %v326 = vrot.slane %v321, %v325
      %v332 = vunpack.c.l.b16 %v317
      %v333 = vunpack.c.l.b16 %v318
      %v334 = vunpack.c.l.b16 %v319
      %v335 = vunpack.c.l.b16 %v320
      %v336 = vpack.c.b16 %v333, %v332
      %v337 = vpack.c.b16 %v335, %v334
      %vm340 = vcmask 261120
      %v342 = vsel %vm340, %v316, 0
      %344 = vmatprep.subr.bf16.mxu0 0
      %345 = vmatpush1.bf16.msra.mxu0 0
      %346 = vmatprep.subr.bf16.mxu0 0
      %347 = vmatpush1.bf16.msra.mxu0 0
      %348 = vmatprep.subr.bf16.mxu0 0
      %349 = vmatpush1.bf16.msra.mxu0 0
      %350 = vmatprep.subr.bf16.mxu0 0
      %351 = vmatpush1.bf16.msra.mxu0 0
      %352 = vmatprep.subr.bf16.mxu0 0
      %353 = vmatpush1.bf16.msra.mxu0 0
      %354 = vmatprep.subr.bf16.mxu0 0
      %355 = vmatpush1.bf16.msra.mxu0 0
      %356 = vmatprep.subr.bf16.mxu0 0
      %357 = vmatpush1.bf16.msra.mxu0 %v337
      %358 = vmatprep.subr.bf16.mxu0 0
      %359 = vmatpush1.bf16.msra.mxu0 %v336
      %360 = vmatprep.subr.bf16.mxu0 0
      %361 = vmatpush2.bf16.msra.mxu0 0
      %362 = vmatprep.subr.bf16.mxu0 0
      %363 = vmatpush2.bf16.msra.mxu0 0
      %364 = vmatprep.subr.bf16.mxu0 0
      %365 = vmatpush2.bf16.msra.mxu0 0
      %366 = vmatprep.subr.bf16.mxu0 0
      %367 = vmatpush2.bf16.msra.mxu0 0
      %368 = vmatprep.subr.bf16.mxu0 0
      %369 = vmatpush2.bf16.msra.mxu0 0
      %370 = vmatprep.subr.bf16.mxu0 0
      %371 = vmatpush2.bf16.msra.mxu0 0
      %372 = vmatprep.subr.bf16.mxu0 0
      %373 = vmatpush2.bf16.msra.mxu0 0
      %374 = vmatprep.subr.bf16.mxu0 0
      %375 = vmatpush2.bf16.msra.mxu0 0
      %376 = vmatprep.mubr.bf16.mxu0 0
      %377 = vmatmul.mubr.bf16.gmra.mxu0 %v342
      %v378 = vpop.f32.mrf.mxu0
      %v379 = vadd.f32 %v326, %v378
      %v380 = vpop.f32.mrf.mxu0
      %v381 = vpop.f32.mrf.mxu0
      %v382 = vpop.f32.mrf.mxu0
      %383 = vdwg.mxu0
      %v384 = vpack.c.bf16 %v379, %v379
      %v385 = vld [vmem:[%s310] sm:$0x1]
      %387 = vrot.lane.b32.xlu0 %v384, 96
      %v388 = vpop.permute.xlu0 %387
      %vm389 = vcmask 130048
      %v391 = vsel %vm389, %v384, 0
      %v394 = vsel %vm389, %v388, 0
      %396 = vmatprep.subr.bf16.mxu0 0
      %397 = vmatpush1.bf16.xpose.msra.mxu0 0
      %398 = vmatprep.subr.bf16.mxu0 0
      %399 = vmatpush1.bf16.xpose.msra.mxu0 0
      %400 = vmatprep.subr.bf16.mxu0 0
      %401 = vmatpush1.bf16.xpose.msra.mxu0 0
      %402 = vmatprep.subr.bf16.mxu0 0
      %403 = vmatpush1.bf16.xpose.msra.mxu0 0
      %404 = vmatprep.subr.bf16.mxu0 0
      %405 = vmatpush1.bf16.xpose.msra.mxu0 0
      %406 = vmatprep.subr.bf16.mxu0 0
      %407 = vmatpush1.bf16.xpose.msra.mxu0 0
      %408 = vmatprep.subr.bf16.mxu0 0
      %409 = vmatpush1.bf16.xpose.msra.mxu0 0
      %410 = vmatprep.subr.bf16.mxu0 0
      %411 = vmatpush1.bf16.xpose.msra.mxu0 %v394
      %412 = vmatprep.subr.bf16.mxu0 0
      %413 = vmatpush2.bf16.xpose.msra.mxu0 0
      %414 = vmatprep.subr.bf16.mxu0 0
      %415 = vmatpush2.bf16.xpose.msra.mxu0 0
      %416 = vmatprep.subr.bf16.mxu0 0
      %417 = vmatpush2.bf16.xpose.msra.mxu0 0
      %418 = vmatprep.subr.bf16.mxu0 0
      %419 = vmatpush2.bf16.xpose.msra.mxu0 0
      %420 = vmatprep.subr.bf16.mxu0 0
      %421 = vmatpush2.bf16.xpose.msra.mxu0 0
      %422 = vmatprep.subr.bf16.mxu0 0
      %423 = vmatpush2.bf16.xpose.msra.mxu0 0
      %424 = vmatprep.subr.bf16.mxu0 0
      %425 = vmatpush2.bf16.xpose.msra.mxu0 0
      %426 = vmatprep.subr.bf16.mxu0 0
      %427 = vmatpush2.bf16.xpose.msra.mxu0 0
      %428 = vmatprep.mubr.bf16.mxu0 0
      %429 = vmatmul.mubr.bf16.gmra.mxu0 %v391
      %v430 = vpop.f32.mrf.mxu0
      %v431 = vadd.f32 0.0, %v430
      %v432 = vpop.f32.mrf.mxu0
      %v433 = vpop.f32.mrf.mxu0
      %v434 = vpop.f32.mrf.mxu0
      %435 = vdwg.mxu0
      %v436 = vmul.f32 %v431, 0.25
      %v438 = vlaneseq
      %v439 = vshrl.u32 %v438, 7
      %v440 = vsub.s32 0, %v439
      %v441 = vrot.slane %v385, %v440
      %v443 = vadd.f32 %v436, %v441
      %vm444 = vcmask 64512
      %v445 = vsel %vm444, %v443, -inf
      %446 = vmax.xlane.f32.xlu0 %v445
      %v447 = vpop.xlane.xlu0 %446
      %v448 = vsub.f32 %v443, %v447
      %v449 = vmul.f32 %v448, 1.442695
      %v450 = vpow.pop %v449
      %v451 = vsel %vm444, %v450, 0.0
      %452 = vadd.xlane.f32.xlu0 %v451
      %v453 = vpop.xlane.xlu0 %452
      %v454 = vrcp.pop %v453
      %v455 = vmul.f32 %v450, %v454
      %v456 = vpack.c.bf16 %v455, %v455
      %457 = vrot.lane.b32.xlu0 %v384, 64
      %v458 = vpop.permute.xlu0 %457
      %v460 = vsel %vm444, %v456, 0
      %vm462 = vcmask 1043456
      %v464 = vsel %vm462, %v458, 0
      %466 = vmatprep.subr.bf16.mxu0 0
      %467 = vmatpush1.bf16.msra.mxu0 0
      %468 = vmatprep.subr.bf16.mxu0 0
      %469 = vmatpush1.bf16.msra.mxu0 0
      %470 = vmatprep.subr.bf16.mxu0 0
      %471 = vmatpush1.bf16.msra.mxu0 0
      %472 = vmatprep.subr.bf16.mxu0 0
      %473 = vmatpush1.bf16.msra.mxu0 0
      %474 = vmatprep.subr.bf16.mxu0 0
      %475 = vmatpush1.bf16.msra.mxu0 0
      %476 = vmatprep.subr.bf16.mxu0 0
      %477 = vmatpush1.bf16.msra.mxu0 0
      %478 = vmatprep.subr.bf16.mxu0 0
      %479 = vmatpush1.bf16.msra.mxu0 0
      %480 = vmatprep.subr.bf16.mxu0 0
      %481 = vmatpush1.bf16.msra.mxu0 %v464
      %482 = vmatprep.subr.bf16.mxu0 0
      %483 = vmatpush2.bf16.msra.mxu0 0
      %484 = vmatprep.subr.bf16.mxu0 0
      %485 = vmatpush2.bf16.msra.mxu0 0
      %486 = vmatprep.subr.bf16.mxu0 0
      %487 = vmatpush2.bf16.msra.mxu0 0
      %488 = vmatprep.subr.bf16.mxu0 0
      %489 = vmatpush2.bf16.msra.mxu0 0
      %490 = vmatprep.subr.bf16.mxu0 0
      %491 = vmatpush2.bf16.msra.mxu0 0
      %492 = vmatprep.subr.bf16.mxu0 0
      %493 = vmatpush2.bf16.msra.mxu0 0
      %494 = vmatprep.subr.bf16.mxu0 0
      %495 = vmatpush2.bf16.msra.mxu0 0
      %496 = vmatprep.subr.bf16.mxu0 0
      %497 = vmatpush2.bf16.msra.mxu0 0
      %498 = vmatprep.mubr.bf16.mxu0 0
      %499 = vmatmul.mubr.bf16.gmra.mxu0 %v460
      %v500 = vpop.f32.mrf.mxu0
      %v501 = vadd.f32 0.0, %v500
      %v502 = vpop.f32.mrf.mxu0
      %v503 = vpop.f32.mrf.mxu0
      %v504 = vpop.f32.mrf.mxu0
      %505 = vdwg.mxu0
      %v506 = vpack.c.bf16 %v501, %v501
      %507 = vrot.lane.b32.xlu0 %v384, 112
      %v508 = vpop.permute.xlu0 %507
      %509 = vrot.lane.b32.xlu0 %v384, 80
      %v510 = vpop.permute.xlu0 %509
      %v512 = vsel %vm389, %v508, 0
      %v515 = vsel %vm389, %v510, 0
      %517 = vmatprep.subr.bf16.mxu0 0
      %518 = vmatpush1.bf16.xpose.msra.mxu0 0
      %519 = vmatprep.subr.bf16.mxu0 0
      %520 = vmatpush1.bf16.xpose.msra.mxu0 0
      %521 = vmatprep.subr.bf16.mxu0 0
      %522 = vmatpush1.bf16.xpose.msra.mxu0 0
      %523 = vmatprep.subr.bf16.mxu0 0
      %524 = vmatpush1.bf16.xpose.msra.mxu0 0
      %525 = vmatprep.subr.bf16.mxu0 0
      %526 = vmatpush1.bf16.xpose.msra.mxu0 0
      %527 = vmatprep.subr.bf16.mxu0 0
      %528 = vmatpush1.bf16.xpose.msra.mxu0 0
      %529 = vmatprep.subr.bf16.mxu0 0
      %530 = vmatpush1.bf16.xpose.msra.mxu0 0
      %531 = vmatprep.subr.bf16.mxu0 0
      %532 = vmatpush1.bf16.xpose.msra.mxu0 %v515
      %533 = vmatprep.subr.bf16.mxu0 0
      %534 = vmatpush2.bf16.xpose.msra.mxu0 0
      %535 = vmatprep.subr.bf16.mxu0 0
      %536 = vmatpush2.bf16.xpose.msra.mxu0 0
      %537 = vmatprep.subr.bf16.mxu0 0
      %538 = vmatpush2.bf16.xpose.msra.mxu0 0
      %539 = vmatprep.subr.bf16.mxu0 0
      %540 = vmatpush2.bf16.xpose.msra.mxu0 0
      %541 = vmatprep.subr.bf16.mxu0 0
      %542 = vmatpush2.bf16.xpose.msra.mxu0 0
      %543 = vmatprep.subr.bf16.mxu0 0
      %544 = vmatpush2.bf16.xpose.msra.mxu0 0
      %545 = vmatprep.subr.bf16.mxu0 0
      %546 = vmatpush2.bf16.xpose.msra.mxu0 0
      %547 = vmatprep.subr.bf16.mxu0 0
      %548 = vmatpush2.bf16.xpose.msra.mxu0 0
      %549 = vmatprep.mubr.bf16.mxu0 0
      %550 = vmatmul.mubr.bf16.gmra.mxu0 %v512
      %v551 = vpop.f32.mrf.mxu0
      %v552 = vadd.f32 0.0, %v551
      %v553 = vpop.f32.mrf.mxu0
      %v554 = vpop.f32.mrf.mxu0
      %v555 = vpop.f32.mrf.mxu0
      %556 = vdwg.mxu0
      %v557 = vmul.f32 %v552, 0.25
      %v558 = vadd.f32 %v557, %v441
      %v559 = vsel %vm444, %v558, -inf
      %560 = vmax.xlane.f32.xlu0 %v559
      %v561 = vpop.xlane.xlu0 %560
      %v562 = vsub.f32 %v558, %v561
      %v563 = vmul.f32 %v562, 1.442695
      %v564 = vpow.pop %v563
      %v565 = vsel %vm444, %v564, 0.0
      %566 = vadd.xlane.f32.xlu0 %v565
      %v567 = vpop.xlane.xlu0 %566
      %v568 = vrcp.pop %v567
      %v569 = vmul.f32 %v564, %v568
      %v570 = vpack.c.bf16 %v569, %v569
      %571 = vrot.lane.b32.xlu0 %v384, 48
      %v572 = vpop.permute.xlu0 %571
      %v574 = vsel %vm444, %v570, 0
      %v577 = vsel %vm462, %v572, 0
      %579 = vmatprep.subr.bf16.mxu0 0
      %580 = vmatpush1.bf16.msra.mxu0 0
      %581 = vmatprep.subr.bf16.mxu0 0
      %582 = vmatpush1.bf16.msra.mxu0 0
      %583 = vmatprep.subr.bf16.mxu0 0
      %584 = vmatpush1.bf16.msra.mxu0 0
      %585 = vmatprep.subr.bf16.mxu0 0
      %586 = vmatpush1.bf16.msra.mxu0 0
      %587 = vmatprep.subr.bf16.mxu0 0
      %588 = vmatpush1.bf16.msra.mxu0 0
      %589 = vmatprep.subr.bf16.mxu0 0
      %590 = vmatpush1.bf16.msra.mxu0 0
      %591 = vmatprep.subr.bf16.mxu0 0
      %592 = vmatpush1.bf16.msra.mxu0 0
      %593 = vmatprep.subr.bf16.mxu0 0
      %594 = vmatpush1.bf16.msra.mxu0 %v577
      %595 = vmatprep.subr.bf16.mxu0 0
      %596 = vmatpush2.bf16.msra.mxu0 0
      %597 = vmatprep.subr.bf16.mxu0 0
      %598 = vmatpush2.bf16.msra.mxu0 0
      %599 = vmatprep.subr.bf16.mxu0 0
      %600 = vmatpush2.bf16.msra.mxu0 0
      %601 = vmatprep.subr.bf16.mxu0 0
      %602 = vmatpush2.bf16.msra.mxu0 0
      %603 = vmatprep.subr.bf16.mxu0 0
      %604 = vmatpush2.bf16.msra.mxu0 0
      %605 = vmatprep.subr.bf16.mxu0 0
      %606 = vmatpush2.bf16.msra.mxu0 0
      %607 = vmatprep.subr.bf16.mxu0 0
      %608 = vmatpush2.bf16.msra.mxu0 0
      %609 = vmatprep.subr.bf16.mxu0 0
      %610 = vmatpush2.bf16.msra.mxu0 0
      %611 = vmatprep.mubr.bf16.mxu0 0
      %612 = vmatmul.mubr.bf16.gmra.mxu0 %v574
      %v613 = vpop.f32.mrf.mxu0
      %v614 = vadd.f32 0.0, %v613
      %v615 = vpop.f32.mrf.mxu0
      %v616 = vpop.f32.mrf.mxu0
      %v617 = vpop.f32.mrf.mxu0
      %618 = vdwg.mxu0
      %v619 = vpack.c.bf16 %v614, %v614
      %621 = vrot.lane.b32.xlu0 %v619, 16
      %v622 = vpop.permute.xlu0 %621
      %v625 = vsel %vm389, %v506, %v622
      %v626 = vld [vmem:[%s4] sm:$0xf]
      %v627 = vld [vmem:[%s4 + $0x4] sm:$0xf]
      %v628 = vld [vmem:[%s4 + $0x8] sm:$0xf]
      %v629 = vld [vmem:[%s4 + $0xc] sm:$0xf]
      %v630 = vld [vmem:[%s5] sm:$0x1]
      %v632 = vlaneseq
      %v633 = vshrl.u32 %v632, 7
      %v634 = vsub.s32 0, %v633
      %v635 = vrot.slane %v630, %v634
      %v641 = vunpack.c.l.b16 %v626
      %v642 = vunpack.c.l.b16 %v627
      %v643 = vunpack.c.l.b16 %v628
      %v644 = vunpack.c.l.b16 %v629
      %v645 = vpack.c.b16 %v642, %v641
      %v646 = vpack.c.b16 %v644, %v643
      %v649 = vsel %vm340, %v625, 0
      %651 = vmatprep.subr.bf16.mxu0 0
      %652 = vmatpush1.bf16.msra.mxu0 0
      %653 = vmatprep.subr.bf16.mxu0 0
      %654 = vmatpush1.bf16.msra.mxu0 0
      %655 = vmatprep.subr.bf16.mxu0 0
      %656 = vmatpush1.bf16.msra.mxu0 0
      %657 = vmatprep.subr.bf16.mxu0 0
      %658 = vmatpush1.bf16.msra.mxu0 0
      %659 = vmatprep.subr.bf16.mxu0 0
      %660 = vmatpush1.bf16.msra.mxu0 0
      %661 = vmatprep.subr.bf16.mxu0 0
      %662 = vmatpush1.bf16.msra.mxu0 0
      %663 = vmatprep.subr.bf16.mxu0 0
      %664 = vmatpush1.bf16.msra.mxu0 %v646
      %665 = vmatprep.subr.bf16.mxu0 0
      %666 = vmatpush1.bf16.msra.mxu0 %v645
      %667 = vmatprep.subr.bf16.mxu0 0
      %668 = vmatpush2.bf16.msra.mxu0 0
      %669 = vmatprep.subr.bf16.mxu0 0
      %670 = vmatpush2.bf16.msra.mxu0 0
      %671 = vmatprep.subr.bf16.mxu0 0
      %672 = vmatpush2.bf16.msra.mxu0 0
      %673 = vmatprep.subr.bf16.mxu0 0
      %674 = vmatpush2.bf16.msra.mxu0 0
      %675 = vmatprep.subr.bf16.mxu0 0
      %676 = vmatpush2.bf16.msra.mxu0 0
      %677 = vmatprep.subr.bf16.mxu0 0
      %678 = vmatpush2.bf16.msra.mxu0 0
      %679 = vmatprep.subr.bf16.mxu0 0
      %680 = vmatpush2.bf16.msra.mxu0 0
      %681 = vmatprep.subr.bf16.mxu0 0
      %682 = vmatpush2.bf16.msra.mxu0 0
      %683 = vmatprep.mubr.bf16.mxu0 0
      %684 = vmatmul.mubr.bf16.gmra.mxu0 %v649
      %v685 = vpop.f32.mrf.mxu0
      %v686 = vadd.f32 %v635, %v685
      %v687 = vpop.f32.mrf.mxu0
      %v688 = vpop.f32.mrf.mxu0
      %v689 = vpop.f32.mrf.mxu0
      %690 = vdwg.mxu0
      %v691 = vunpack.c.l.bf16 %v316
      %v692 = vadd.f32 %v686, %v691
      %v693 = vld [vmem:[%s6] sm:$0x1]
      %v694 = vld [vmem:[%s7] sm:$0x1]
      %v695 = vsel %vm340, %v692, 0.0
      %696 = vadd.xlane.f32.xlu0 %v695
      %v697 = vpop.xlane.xlu0 %696
      %v698 = vrcp.pop 32.0
      %v699 = vmul.f32 %v697, %v698
      %v700 = vsub.f32 %v692, %v699
      %v701 = vmul.f32 %v700, %v700
      %v702 = vsel %vm340, %v701, 0.0
      %703 = vadd.xlane.f32.xlu0 %v702
      %v704 = vpop.xlane.xlu0 %703
      %v705 = vmul.f32 %v704, %v698
      %v706 = vadd.f32 %v705, 1e-12
      %v707 = vrsqrt.pop %v706
      %v708 = vmul.f32 %v700, %v707
      %v710 = vlaneseq
      %v711 = vshrl.u32 %v710, 7
      %v712 = vsub.s32 0, %v711
      %v713 = vrot.slane %v693, %v712
      %v715 = vmul.f32 %v708, %v713
      %v717 = vlaneseq
      %v718 = vshrl.u32 %v717, 7
      %v719 = vsub.s32 0, %v718
      %v720 = vrot.slane %v694, %v719
      %v722 = vadd.f32 %v715, %v720
      %v723 = vpack.c.bf16 %v722, %v722
      %vm724 = vcmask 257024
      %725 = vst.msk [vmem:[%s314] sm:$0xf] %vm724, %v723
      %p726 = scmp.lt.s32.totalorder %s19, 1
      %s727 = scalar_select %p726, %s19, 1
      %s728 = smul.addr %s727, 4
      %s729 = scalar_lea.vmem %s8, %s728
      // Predicated region
      $region53: #{rubert_lin_text_forward.6} parent=51 // pred_check
        %p730 = pneg %p215
      $region54: #{rubert_lin_text_forward.6} parent=51 // pred_check_branch
        %732 = sbr.rel (%p730) target = $region56
      $region55: #{rubert_lin_text_forward.6} parent=51 // pred_region
        _
      $region56: #{rubert_lin_text_forward.6} parent=51 // pred_fallthru
        _
    $region52: #{rubert_lin_text_forward.6} parent=5 // pred_fallthru
      _
    %p733 = scmp.le.s32.totalorder 2, %s14
    // Predicated region
    $region57: #{rubert_lin_text_forward.6} parent=5 // pred_check
      %p734 = pneg %p733
    $region58: #{rubert_lin_text_forward.6} parent=5 // pred_check_branch
      %736 = sbr.rel (%p734) target = $region60
    $region59: #{rubert_lin_text_forward.6} parent=5 // pred_region
      %s737 = ssub.s32 %s14, 2
      // Predicated region
      $region61: #{rubert_lin_text_forward.6} parent=59 // pred_check
        %p738 = pneg %p221
      $region62: #{rubert_lin_text_forward.6} parent=59 // pred_check_branch
        %740 = sbr.rel (%p738) target = $region64
      $region63: #{rubert_lin_text_forward.6} parent=59 // pred_region
        %p741 = scmp.lt.s32.totalorder %s20, 1
        %s742 = scalar_select %p741, %s20, 1
        %s743 = smul.addr %s742, 4
        %s744 = scalar_lea.vmem %s8, %s743
      $region64: #{rubert_lin_text_forward.6} parent=59 // pred_fallthru
        _
    $region60: #{rubert_lin_text_forward.6} parent=5 // pred_fallthru
      _
  $region6: #{rubert_lin_text_forward.6} parent=0 // loop_footer
    %s18 = sadd.s32 1, %s14
  $region7: #{rubert_lin_text_forward.6} parent=0 // loop_footer_branch
    %13 = sbr.rel target = $region3
  $region8: #{rubert_lin_text_forward.6} parent=0 // loop_exit
    _

</llo_original>
